<compile_context>
chip_gen: v7x
topology: tpu7x:2x2x1
jax: 0.10.0
libtpu: 0.0.40
codegen_flags: <defaults>
</compile_context>

<pallas_src>
import functools

import jax
import jax.numpy as jnp
from jax.experimental import pallas as pl
from jax.experimental.pallas import tpu as pltpu


def _round_up(x, m):
    return ((x + m - 1) // m) * m


# ----------------------------------------------------------------------------
# Pallas kernel: quaternion (Hamilton) block matmul with K accumulation
# ----------------------------------------------------------------------------
def _qlinear_kernel(*refs, has_bias):
    if has_bias:
        x_ref, w_ref, b_ref, o_ref, acc_ref = refs
    else:
        x_ref, w_ref, o_ref, acc_ref = refs
        b_ref = None

    k = pl.program_id(2)

    @pl.when(k == 0)
    def _():
        acc_ref[...] = jnp.zeros_like(acc_ref)

    xr, xi, xj, xk = x_ref[0], x_ref[1], x_ref[2], x_ref[3]   # (tm, tk) each
    wr, wi, wj, wk = w_ref[0], w_ref[1], w_ref[2], w_ref[3]   # (tk, tn) each

    def dot(a, b):
        return jnp.dot(a, b, preferred_element_type=jnp.float32)

    # Hamilton right-multiplication block structure (input order [r|i|j|k],
    # output order [r|i|j|k]):
    #   [ r  i  j  k ]
    #   [-i  r -k  j ]
    #   [-j  k  r -i ]
    #   [-k -j  i  r ]
    acc_ref[0, :, :] += dot(xr, wr) - dot(xi, wi) - dot(xj, wj) - dot(xk, wk)
    acc_ref[1, :, :] += dot(xr, wi) + dot(xi, wr) + dot(xj, wk) - dot(xk, wj)
    acc_ref[2, :, :] += dot(xr, wj) - dot(xi, wk) + dot(xj, wr) + dot(xk, wi)
    acc_ref[3, :, :] += dot(xr, wk) + dot(xi, wj) - dot(xj, wi) + dot(xk, wr)

    @pl.when(k == pl.num_programs(2) - 1)
    def _():
        out = acc_ref[...]
        if has_bias:
            out = out + b_ref[...]          # (4, 1, tn) broadcasts over rows
        o_ref[...] = out.astype(o_ref.dtype)


def qlinear_forward(x, wq, bias=None, *, tm=256, tn=256, tk=512, use_bf16=False):
    """Quaternion linear forward.

    x:    (B, 4*in_c) activations, quaternion components [r|i|j|k] concatenated
          along the feature axis.
    wq:   (4, in_c, out_c) stacked quaternion weight components (r, i, j, k).
    bias: (4*out_c,) or None.
    Returns (B, 4*out_c) == x @ real_repr(wq) (+ bias).
    """
    B, K4 = x.shape
    four, in_c, out_c = wq.shape
    assert four == 4 and K4 == 4 * in_c, (x.shape, wq.shape)
    out_dtype = x.dtype

    # Component-major activations: (4, B, in_c) — layout plumbing done by XLA.
    xq = jnp.transpose(x.reshape(B, 4, in_c), (1, 0, 2))

    # Clamp tile sizes to the (padded) problem, keep sublane/lane alignment.
    tm = _round_up(min(tm, _round_up(B, 8)), 8)           # MXU-tall row tile
    tk = _round_up(min(tk, _round_up(in_c, 128)), 128)    # contraction tile
    tn = _round_up(min(tn, _round_up(out_c, 128)), 128)   # lane-dense out tile

    Bp = _round_up(B, tm)
    Kp = _round_up(in_c, tk)
    Np = _round_up(out_c, tn)

    # bf16 MXU inputs (v6e/v7x fast path); accumulation stays f32 in VMEM.
    compute_dtype = jnp.bfloat16 if use_bf16 else x.dtype

    xq = jnp.pad(xq, ((0, 0), (0, Bp - B), (0, Kp - in_c))).astype(compute_dtype)
    wqp = jnp.pad(wq, ((0, 0), (0, Kp - in_c), (0, Np - out_c))).astype(compute_dtype)

    operands = [xq, wqp]
    in_specs = [
        pl.BlockSpec((4, tm, tk), lambda i, j, k: (0, i, k)),   # x row/K tile
        pl.BlockSpec((4, tk, tn), lambda i, j, k: (0, k, j)),   # weight K/N tile
    ]
    has_bias = bias is not None
    if has_bias:
        b = bias.reshape(4, 1, out_c).astype(jnp.float32)
        b = jnp.pad(b, ((0, 0), (0, 0), (0, Np - out_c)))
        operands.append(b)
        in_specs.append(pl.BlockSpec((4, 1, tn), lambda i, j, k: (0, 0, j)))

    grid = (Bp // tm, Np // tn, Kp // tk)

    yq = pl.pallas_call(
        functools.partial(_qlinear_kernel, has_bias=has_bias),
        out_shape=jax.ShapeDtypeStruct((4, Bp, Np), out_dtype),
        grid_spec=pltpu.PrefetchScalarGridSpec(
            num_scalar_prefetch=0,
            grid=grid,
            in_specs=in_specs,
            out_specs=pl.BlockSpec((4, tm, tn), lambda i, j, k: (0, i, j)),
            scratch_shapes=[pltpu.VMEM((4, tm, tn), jnp.float32)],
        ),
        compiler_params=pltpu.CompilerParams(
            # batch / out-feature tiles are independent (megacore-shardable);
            # the K axis carries the accumulator.
            dimension_semantics=("parallel", "parallel", "arbitrary"),
            vmem_limit_bytes=32 * 1024 * 1024,
        ),
    )(*operands)

    # (4, Bp, Np) -> (B, 4*out_c), dropping row / lane padding.
    return jnp.transpose(yq[:, :B, :out_c], (1, 0, 2)).reshape(B, 4 * out_c)


# ----------------------------------------------------------------------------
# Parameter construction (mirrors htorch initialize_linear + _real_repr)
# ----------------------------------------------------------------------------
def initialize_linear(key, in_channels, out_channels):
    """Quaternion-aware init; returns component matrices r,i,j,k (in_c, out_c)."""
    k_mod, k_phase, k_vec = jax.random.split(key, 3)
    fan_in, fan_out = in_channels, out_channels
    sigma = 1.0 / jnp.sqrt(2.0 * (fan_in + fan_out))

    shape = (in_channels, out_channels)
    u = jax.random.uniform(k_mod, shape, minval=1e-6, maxval=1.0)
    modulus = sigma * jnp.sqrt(-2.0 * jnp.log(u))
    phase = jax.random.uniform(k_phase, shape, minval=-jnp.pi, maxval=jnp.pi)
    v = jax.random.normal(k_vec, (3,) + shape)
    v = v / (jnp.linalg.norm(v, axis=0, keepdims=True) + 1e-12)

    r = modulus * jnp.cos(phase)
    i = modulus * v[0] * jnp.sin(phase)
    j = modulus * v[1] * jnp.sin(phase)
    k = modulus * v[2] * jnp.sin(phase)
    return r, i, j, k


def real_repr(r, i, j, k):
    """Dense Hamilton real representation (reference / export only)."""
    return jnp.block([
        [ r,  i,  j,  k],
        [-i,  r, -k,  j],
        [-j,  k,  r, -i],
        [-k, -j,  i,  r],
    ])


class QAutogradLinear:
    """JAX/Pallas port of htorch.layers.QAutogradLinear (forward only)."""

    def __init__(self, in_channels, out_channels, bias=False, spinor=False,
                 *, use_bf16=False, key=None):
        self.in_channels = in_channels
        self.out_channels = out_channels
        self.use_bf16 = use_bf16
        if spinor:
            # TODO(synk): spinor=True uses the rotation representation
            # (_real_rot_repr, W q W*); not implemented here.
            raise NotImplementedError("spinor=True not implemented")
        if key is None:
            key = jax.random.PRNGKey(0)
        r, i, j, k = initialize_linear(key, in_channels, out_channels)
        # Only the 4 components are stored (no 4x-redundant dense weight in HBM).
        self.wq = jnp.stack([r, i, j, k]).astype(jnp.float32)   # (4, in_c, out_c)
        self.bias = (jnp.zeros((out_channels * 4,), jnp.float32) if bias else None)

    def dense_weight(self):
        """(4*in_c, 4*out_c) Hamilton matrix — for reference checks only."""
        return real_repr(self.wq[0], self.wq[1], self.wq[2], self.wq[3])

    def __call__(self, x):
        return qlinear_forward(x, self.wq, self.bias, use_bf16=self.use_bf16)


# ----------------------------------------------------------------------------
if __name__ == "__main__":
    in_channels, out_channels, batch = 8, 8, 16  # x: (16, 32), W: (32, 32)

    key = jax.random.PRNGKey(0)
    k_w, k_x = jax.random.split(key)

    x = jax.random.normal(k_x, (batch, 4 * in_channels), dtype=jnp.float32)

    # f32 path, with bias.
    layer = QAutogradLinear(in_channels, out_channels, bias=True, key=k_w)
    y = jax.block_until_ready(layer(x))
    y_ref = x @ layer.dense_weight() + layer.bias
    assert y.shape == (batch, 4 * out_channels)
    assert jnp.allclose(y, y_ref, atol=1e-4, rtol=1e-4), "mismatch vs reference"

    # f32 path, no bias (exercises the bias-free code path — no zero operand).
    layer_nb = QAutogradLinear(in_channels, out_channels, bias=False, key=k_w)
    y_nb = jax.block_until_ready(layer_nb(x))
    assert jnp.allclose(y_nb, x @ layer_nb.dense_weight(), atol=1e-4, rtol=1e-4)

    # bf16 MXU-input path (v6e/v7x recommendation); loose tolerance.
    layer_bf = QAutogradLinear(in_channels, out_channels, bias=True,
                               use_bf16=True, key=k_w)
    y_bf = jax.block_until_ready(layer_bf(x))
    assert y_bf.shape == (batch, 4 * out_channels)
    assert jnp.max(jnp.abs(y_bf - y_ref)) < 1e-1

    print("KERNEL_OK")
</pallas_src>

<mosaic_0001>
module attributes {stable_mosaic.version = 11 : i64} {
  func.func @_qlinear_kernel(%arg0: i32, %arg1: i32, %arg2: i32, %arg3: memref<4x16x128xf32, #tpu.memory_space<vmem>>, %arg4: memref<4x128x128xf32, #tpu.memory_space<vmem>>, %arg5: memref<4x1x128xf32, #tpu.memory_space<vmem>>, %arg6: memref<4x16x128xf32, #tpu.memory_space<vmem>>, %arg7: memref<4x16x128xf32, #tpu.memory_space<vmem>>) attributes {dimension_semantics = [#tpu.dimension_semantics<parallel>, #tpu.dimension_semantics<parallel>, #tpu.dimension_semantics<arbitrary>], iteration_bounds = array<i64: 1, 1, 1>, scalar_prefetch = 0 : i64, scratch_operands = 1 : i64, tpu.core_type = #tpu.core_type<tc>, window_params = [{transform_indices = @transform_0, window_bounds = array<i64: 4, 16, 128>}, {transform_indices = @transform_1, window_bounds = array<i64: 4, 128, 128>}, {transform_indices = @transform_2, window_bounds = array<i64: 4, 1, 128>}, {transform_indices = @transform_3, window_bounds = array<i64: 4, 16, 128>}]} {
    %c0_i32 = arith.constant 0 : i32
    %0 = arith.cmpi eq, %arg2, %c0_i32 : i32
    %1 = arith.extui %0 : i1 to i32
    %c0_i32_0 = arith.constant 0 : i32
    %2 = arith.cmpi ne, %1, %c0_i32_0 : i32
    scf.if %2 {
      %cst_62 = arith.constant 0.000000e+00 : f32
      %74 = vector.broadcast %cst_62 : f32 to vector<4x16x128xf32>
      %c0_63 = arith.constant 0 : index
      %c0_64 = arith.constant 0 : index
      %c0_65 = arith.constant 0 : index
      %75 = vector.load %arg7[%c0_63, %c0_64, %c0_65] : memref<4x16x128xf32, #tpu.memory_space<vmem>>, vector<4x16x128xf32>
      tpu.vector_store %arg7[%c0_63, %c0_64, %c0_65], %74 {strides = array<i32>} : memref<4x16x128xf32, #tpu.memory_space<vmem>>, vector<4x16x128xf32>,
    } else {
    }
    %c0 = arith.constant 0 : index
    %c0_1 = arith.constant 0 : index
    %c0_2 = arith.constant 0 : index
    %3 = vector.load %arg3[%c0, %c0_1, %c0_2] : memref<4x16x128xf32, #tpu.memory_space<vmem>>, vector<1x16x128xf32>
    %4 = vector.shape_cast %3 : vector<1x16x128xf32> to vector<16x128xf32>
    %c1 = arith.constant 1 : index
    %c0_3 = arith.constant 0 : index
    %c0_4 = arith.constant 0 : index
    %5 = vector.load %arg3[%c1, %c0_3, %c0_4] : memref<4x16x128xf32, #tpu.memory_space<vmem>>, vector<1x16x128xf32>
    %6 = vector.shape_cast %5 : vector<1x16x128xf32> to vector<16x128xf32>
    %c2 = arith.constant 2 : index
    %c0_5 = arith.constant 0 : index
    %c0_6 = arith.constant 0 : index
    %7 = vector.load %arg3[%c2, %c0_5, %c0_6] : memref<4x16x128xf32, #tpu.memory_space<vmem>>, vector<1x16x128xf32>
    %8 = vector.shape_cast %7 : vector<1x16x128xf32> to vector<16x128xf32>
    %c3 = arith.constant 3 : index
    %c0_7 = arith.constant 0 : index
    %c0_8 = arith.constant 0 : index
    %9 = vector.load %arg3[%c3, %c0_7, %c0_8] : memref<4x16x128xf32, #tpu.memory_space<vmem>>, vector<1x16x128xf32>
    %10 = vector.shape_cast %9 : vector<1x16x128xf32> to vector<16x128xf32>
    %c0_9 = arith.constant 0 : index
    %c0_10 = arith.constant 0 : index
    %c0_11 = arith.constant 0 : index
    %11 = vector.load %arg4[%c0_9, %c0_10, %c0_11] : memref<4x128x128xf32, #tpu.memory_space<vmem>>, vector<1x128x128xf32>
    %12 = vector.shape_cast %11 : vector<1x128x128xf32> to vector<128x128xf32>
    %c1_12 = arith.constant 1 : index
    %c0_13 = arith.constant 0 : index
    %c0_14 = arith.constant 0 : index
    %13 = vector.load %arg4[%c1_12, %c0_13, %c0_14] : memref<4x128x128xf32, #tpu.memory_space<vmem>>, vector<1x128x128xf32>
    %14 = vector.shape_cast %13 : vector<1x128x128xf32> to vector<128x128xf32>
    %c2_15 = arith.constant 2 : index
    %c0_16 = arith.constant 0 : index
    %c0_17 = arith.constant 0 : index
    %15 = vector.load %arg4[%c2_15, %c0_16, %c0_17] : memref<4x128x128xf32, #tpu.memory_space<vmem>>, vector<1x128x128xf32>
    %16 = vector.shape_cast %15 : vector<1x128x128xf32> to vector<128x128xf32>
    %c3_18 = arith.constant 3 : index
    %c0_19 = arith.constant 0 : index
    %c0_20 = arith.constant 0 : index
    %17 = vector.load %arg4[%c3_18, %c0_19, %c0_20] : memref<4x128x128xf32, #tpu.memory_space<vmem>>, vector<1x128x128xf32>
    %18 = vector.shape_cast %17 : vector<1x128x128xf32> to vector<128x128xf32>
    %c0_21 = arith.constant 0 : index
    %c0_22 = arith.constant 0 : index
    %c0_23 = arith.constant 0 : index
    %19 = vector.load %arg7[%c0_21, %c0_22, %c0_23] : memref<4x16x128xf32, #tpu.memory_space<vmem>>, vector<1x16x128xf32>
    %20 = vector.shape_cast %19 : vector<1x16x128xf32> to vector<16x128xf32>
    %cst = arith.constant dense<0.000000e+00> : vector<16x128xf32>
    %21 = tpu.matmul %4, %12, %cst {dimension_numbers = #tpu.dot_dimension_numbers<[1], [0], [0], [1], [0, 0, 1, 1], [], []>} : vector<16x128xf32>, vector<128x128xf32>, vector<16x128xf32> -> vector<16x128xf32>
    %cst_24 = arith.constant dense<0.000000e+00> : vector<16x128xf32>
    %22 = tpu.matmul %6, %14, %cst_24 {dimension_numbers = #tpu.dot_dimension_numbers<[1], [0], [0], [1], [0, 0, 1, 1], [], []>} : vector<16x128xf32>, vector<128x128xf32>, vector<16x128xf32> -> vector<16x128xf32>
    %23 = arith.subf %21, %22 : vector<16x128xf32>
    %cst_25 = arith.constant dense<0.000000e+00> : vector<16x128xf32>
    %24 = tpu.matmul %8, %16, %cst_25 {dimension_numbers = #tpu.dot_dimension_numbers<[1], [0], [0], [1], [0, 0, 1, 1], [], []>} : vector<16x128xf32>, vector<128x128xf32>, vector<16x128xf32> -> vector<16x128xf32>
    %25 = arith.subf %23, %24 : vector<16x128xf32>
    %cst_26 = arith.constant dense<0.000000e+00> : vector<16x128xf32>
    %26 = tpu.matmul %10, %18, %cst_26 {dimension_numbers = #tpu.dot_dimension_numbers<[1], [0], [0], [1], [0, 0, 1, 1], [], []>} : vector<16x128xf32>, vector<128x128xf32>, vector<16x128xf32> -> vector<16x128xf32>
    %27 = arith.subf %25, %26 : vector<16x128xf32>
    %28 = arith.addf %20, %27 : vector<16x128xf32>
    %c0_27 = arith.constant 0 : index
    %c0_28 = arith.constant 0 : index
    %c0_29 = arith.constant 0 : index
    %29 = vector.load %arg7[%c0_27, %c0_28, %c0_29] : memref<4x16x128xf32, #tpu.memory_space<vmem>>, vector<1x16x128xf32>
    %30 = vector.shape_cast %29 : vector<1x16x128xf32> to vector<16x128xf32>
    %31 = vector.shape_cast %28 : vector<16x128xf32> to vector<1x16x128xf32>
    tpu.vector_store %arg7[%c0_27, %c0_28, %c0_29], %31 {strides = array<i32>} : memref<4x16x128xf32, #tpu.memory_space<vmem>>, vector<1x16x128xf32>,
    %c1_30 = arith.constant 1 : index
    %c0_31 = arith.constant 0 : index
    %c0_32 = arith.constant 0 : index
    %32 = vector.load %arg7[%c1_30, %c0_31, %c0_32] : memref<4x16x128xf32, #tpu.memory_space<vmem>>, vector<1x16x128xf32>
    %33 = vector.shape_cast %32 : vector<1x16x128xf32> to vector<16x128xf32>
    %cst_33 = arith.constant dense<0.000000e+00> : vector<16x128xf32>
    %34 = tpu.matmul %4, %14, %cst_33 {dimension_numbers = #tpu.dot_dimension_numbers<[1], [0], [0], [1], [0, 0, 1, 1], [], []>} : vector<16x128xf32>, vector<128x128xf32>, vector<16x128xf32> -> vector<16x128xf32>
    %cst_34 = arith.constant dense<0.000000e+00> : vector<16x128xf32>
    %35 = tpu.matmul %6, %12, %cst_34 {dimension_numbers = #tpu.dot_dimension_numbers<[1], [0], [0], [1], [0, 0, 1, 1], [], []>} : vector<16x128xf32>, vector<128x128xf32>, vector<16x128xf32> -> vector<16x128xf32>
    %36 = arith.addf %34, %35 : vector<16x128xf32>
    %cst_35 = arith.constant dense<0.000000e+00> : vector<16x128xf32>
    %37 = tpu.matmul %8, %18, %cst_35 {dimension_numbers = #tpu.dot_dimension_numbers<[1], [0], [0], [1], [0, 0, 1, 1], [], []>} : vector<16x128xf32>, vector<128x128xf32>, vector<16x128xf32> -> vector<16x128xf32>
    %38 = arith.addf %36, %37 : vector<16x128xf32>
    %cst_36 = arith.constant dense<0.000000e+00> : vector<16x128xf32>
    %39 = tpu.matmul %10, %16, %cst_36 {dimension_numbers = #tpu.dot_dimension_numbers<[1], [0], [0], [1], [0, 0, 1, 1], [], []>} : vector<16x128xf32>, vector<128x128xf32>, vector<16x128xf32> -> vector<16x128xf32>
    %40 = arith.subf %38, %39 : vector<16x128xf32>
    %41 = arith.addf %33, %40 : vector<16x128xf32>
    %c1_37 = arith.constant 1 : index
    %c0_38 = arith.constant 0 : index
    %c0_39 = arith.constant 0 : index
    %42 = vector.load %arg7[%c1_37, %c0_38, %c0_39] : memref<4x16x128xf32, #tpu.memory_space<vmem>>, vector<1x16x128xf32>
    %43 = vector.shape_cast %42 : vector<1x16x128xf32> to vector<16x128xf32>
    %44 = vector.shape_cast %41 : vector<16x128xf32> to vector<1x16x128xf32>
    tpu.vector_store %arg7[%c1_37, %c0_38, %c0_39], %44 {strides = array<i32>} : memref<4x16x128xf32, #tpu.memory_space<vmem>>, vector<1x16x128xf32>,
    %c2_40 = arith.constant 2 : index
    %c0_41 = arith.constant 0 : index
    %c0_42 = arith.constant 0 : index
    %45 = vector.load %arg7[%c2_40, %c0_41, %c0_42] : memref<4x16x128xf32, #tpu.memory_space<vmem>>, vector<1x16x128xf32>
    %46 = vector.shape_cast %45 : vector<1x16x128xf32> to vector<16x128xf32>
    %cst_43 = arith.constant dense<0.000000e+00> : vector<16x128xf32>
    %47 = tpu.matmul %4, %16, %cst_43 {dimension_numbers = #tpu.dot_dimension_numbers<[1], [0], [0], [1], [0, 0, 1, 1], [], []>} : vector<16x128xf32>, vector<128x128xf32>, vector<16x128xf32> -> vector<16x128xf32>
    %cst_44 = arith.constant dense<0.000000e+00> : vector<16x128xf32>
    %48 = tpu.matmul %6, %18, %cst_44 {dimension_numbers = #tpu.dot_dimension_numbers<[1], [0], [0], [1], [0, 0, 1, 1], [], []>} : vector<16x128xf32>, vector<128x128xf32>, vector<16x128xf32> -> vector<16x128xf32>
    %49 = arith.subf %47, %48 : vector<16x128xf32>
    %cst_45 = arith.constant dense<0.000000e+00> : vector<16x128xf32>
    %50 = tpu.matmul %8, %12, %cst_45 {dimension_numbers = #tpu.dot_dimension_numbers<[1], [0], [0], [1], [0, 0, 1, 1], [], []>} : vector<16x128xf32>, vector<128x128xf32>, vector<16x128xf32> -> vector<16x128xf32>
    %51 = arith.addf %49, %50 : vector<16x128xf32>
    %cst_46 = arith.constant dense<0.000000e+00> : vector<16x128xf32>
    %52 = tpu.matmul %10, %14, %cst_46 {dimension_numbers = #tpu.dot_dimension_numbers<[1], [0], [0], [1], [0, 0, 1, 1], [], []>} : vector<16x128xf32>, vector<128x128xf32>, vector<16x128xf32> -> vector<16x128xf32>
    %53 = arith.addf %51, %52 : vector<16x128xf32>
    %54 = arith.addf %46, %53 : vector<16x128xf32>
    %c2_47 = arith.constant 2 : index
    %c0_48 = arith.constant 0 : index
    %c0_49 = arith.constant 0 : index
    %55 = vector.load %arg7[%c2_47, %c0_48, %c0_49] : memref<4x16x128xf32, #tpu.memory_space<vmem>>, vector<1x16x128xf32>
    %56 = vector.shape_cast %55 : vector<1x16x128xf32> to vector<16x128xf32>
    %57 = vector.shape_cast %54 : vector<16x128xf32> to vector<1x16x128xf32>
    tpu.vector_store %arg7[%c2_47, %c0_48, %c0_49], %57 {strides = array<i32>} : memref<4x16x128xf32, #tpu.memory_space<vmem>>, vector<1x16x128xf32>,
    %c3_50 = arith.constant 3 : index
    %c0_51 = arith.constant 0 : index
    %c0_52 = arith.constant 0 : index
    %58 = vector.load %arg7[%c3_50, %c0_51, %c0_52] : memref<4x16x128xf32, #tpu.memory_space<vmem>>, vector<1x16x128xf32>
    %59 = vector.shape_cast %58 : vector<1x16x128xf32> to vector<16x128xf32>
    %cst_53 = arith.constant dense<0.000000e+00> : vector<16x128xf32>
    %60 = tpu.matmul %4, %18, %cst_53 {dimension_numbers = #tpu.dot_dimension_numbers<[1], [0], [0], [1], [0, 0, 1, 1], [], []>} : vector<16x128xf32>, vector<128x128xf32>, vector<16x128xf32> -> vector<16x128xf32>
    %cst_54 = arith.constant dense<0.000000e+00> : vector<16x128xf32>
    %61 = tpu.matmul %6, %16, %cst_54 {dimension_numbers = #tpu.dot_dimension_numbers<[1], [0], [0], [1], [0, 0, 1, 1], [], []>} : vector<16x128xf32>, vector<128x128xf32>, vector<16x128xf32> -> vector<16x128xf32>
    %62 = arith.addf %60, %61 : vector<16x128xf32>
    %cst_55 = arith.constant dense<0.000000e+00> : vector<16x128xf32>
    %63 = tpu.matmul %8, %14, %cst_55 {dimension_numbers = #tpu.dot_dimension_numbers<[1], [0], [0], [1], [0, 0, 1, 1], [], []>} : vector<16x128xf32>, vector<128x128xf32>, vector<16x128xf32> -> vector<16x128xf32>
    %64 = arith.subf %62, %63 : vector<16x128xf32>
    %cst_56 = arith.constant dense<0.000000e+00> : vector<16x128xf32>
    %65 = tpu.matmul %10, %12, %cst_56 {dimension_numbers = #tpu.dot_dimension_numbers<[1], [0], [0], [1], [0, 0, 1, 1], [], []>} : vector<16x128xf32>, vector<128x128xf32>, vector<16x128xf32> -> vector<16x128xf32>
    %66 = arith.addf %64, %65 : vector<16x128xf32>
    %67 = arith.addf %59, %66 : vector<16x128xf32>
    %c3_57 = arith.constant 3 : index
    %c0_58 = arith.constant 0 : index
    %c0_59 = arith.constant 0 : index
    %68 = vector.load %arg7[%c3_57, %c0_58, %c0_59] : memref<4x16x128xf32, #tpu.memory_space<vmem>>, vector<1x16x128xf32>
    %69 = vector.shape_cast %68 : vector<1x16x128xf32> to vector<16x128xf32>
    %70 = vector.shape_cast %67 : vector<16x128xf32> to vector<1x16x128xf32>
    tpu.vector_store %arg7[%c3_57, %c0_58, %c0_59], %70 {strides = array<i32>} : memref<4x16x128xf32, #tpu.memory_space<vmem>>, vector<1x16x128xf32>,
    %c0_i32_60 = arith.constant 0 : i32
    %71 = arith.cmpi eq, %arg2, %c0_i32_60 : i32
    %72 = arith.extui %71 : i1 to i32
    %c0_i32_61 = arith.constant 0 : i32
    %73 = arith.cmpi ne, %72, %c0_i32_61 : i32
    scf.if %73 {
      %c0_62 = arith.constant 0 : index
      %c0_63 = arith.constant 0 : index
      %c0_64 = arith.constant 0 : index
      %74 = vector.load %arg7[%c0_62, %c0_63, %c0_64] : memref<4x16x128xf32, #tpu.memory_space<vmem>>, vector<4x16x128xf32>
      %c0_65 = arith.constant 0 : index
      %c0_66 = arith.constant 0 : index
      %c0_67 = arith.constant 0 : index
      %75 = vector.load %arg5[%c0_65, %c0_66, %c0_67] : memref<4x1x128xf32, #tpu.memory_space<vmem>>, vector<4x1x128xf32>
      %76 = vector.broadcast %75 : vector<4x1x128xf32> to vector<4x16x128xf32>
      %77 = arith.addf %74, %76 : vector<4x16x128xf32>
      %c0_68 = arith.constant 0 : index
      %c0_69 = arith.constant 0 : index
      %c0_70 = arith.constant 0 : index
      %78 = vector.load %arg6[%c0_68, %c0_69, %c0_70] : memref<4x16x128xf32, #tpu.memory_space<vmem>>, vector<4x16x128xf32>
      tpu.vector_store %arg6[%c0_68, %c0_69, %c0_70], %77 {strides = array<i32>} : memref<4x16x128xf32, #tpu.memory_space<vmem>>, vector<4x16x128xf32>,
    } else {
    }
    return
  }
  func.func @transform_0(%arg0: i32, %arg1: i32, %arg2: i32) -> (i32, i32, i32) {
    %c0_i32 = arith.constant 0 : i32
    %c0_i32_0 = arith.constant 0 : i32
    return %c0_i32, %arg0, %arg2 : i32, i32, i32
  }
  func.func @transform_1(%arg0: i32, %arg1: i32, %arg2: i32) -> (i32, i32, i32) {
    %c0_i32 = arith.constant 0 : i32
    %c0_i32_0 = arith.constant 0 : i32
    return %c0_i32, %arg2, %arg1 : i32, i32, i32
  }
  func.func @transform_2(%arg0: i32, %arg1: i32, %arg2: i32) -> (i32, i32, i32) {
    %c0_i32 = arith.constant 0 : i32
    %c0_i32_0 = arith.constant 0 : i32
    %c0_i32_1 = arith.constant 0 : i32
    return %c0_i32, %c0_i32_0, %arg1 : i32, i32, i32
  }
  func.func @transform_3(%arg0: i32, %arg1: i32, %arg2: i32) -> (i32, i32, i32) {
    %c0_i32 = arith.constant 0 : i32
    %c0_i32_0 = arith.constant 0 : i32
    return %c0_i32, %arg0, %arg1 : i32, i32, i32
  }
}

</mosaic_0001>

<llo_original>
// kernel: tpu_custom_call.1
$region0: #{tpu_custom_call.1}
  #allocation0 [shape = 'u32[]', space=smem, size = 0x4, offset = 0x4, fixed_abs, tag = 'smem constant byte address 0x4 - core index']
  #allocation1 [shape = 'u32[144,128]{1,0:T(1,128)}', space=vmem, size = 0x12000, scoped, tag = 'internal scratch']
  #allocation2 [shape = 'f32[4,16,128]{2,1,0:T(8,128)}', space=vmem, size = 0x8000, scoped, tag = 'scratch operand']
  %s0 = inlined_call_operand.hbm [shape: f32[4,16,128], index: 0, kind: input, shape index: {}]
  %s1 = inlined_call_operand.hbm [shape: f32[4,128,128], index: 1, kind: input, shape index: {}]
  %s2 = inlined_call_operand.vmem [shape: f32[4,1,128], index: 2, kind: input, shape index: {}]
  %s3 = inlined_call_operand.hbm [shape: f32[4,16,128], index: 3, kind: output, shape index: {}]
  %s4 = sld [smem:[#allocation0]]
  $region38: #{tpu_custom_call.1} parent=0
    _
  %s6 = ssub.s32 1, %s4
  %s7 = scalar_select 0, %s6, %s4
  $region1: #{tpu_custom_call.1} parent=0
    #allocation3 [shape = 'u8[32768]{0}', space=vmem, size = 0x8000, scoped, tag = 'input window, operand 0, single buffered']
    #allocation4 [shape = 's32[1]{0}', space=sflag, size = 0x4, scoped, tag = 'scoped memory for tpu_custom_call.1']
    #allocation5 [shape = 's32[1]{0}', space=sflag, size = 0x4, scoped, tag = 'scoped memory for tpu_custom_call.1']
    #allocation6 [shape = 'u8[262144]{0}', space=vmem, size = 0x40000, scoped, tag = 'input window, operand 1, single buffered']
    #allocation7 [shape = 's32[1]{0}', space=sflag, size = 0x4, scoped, tag = 'scoped memory for tpu_custom_call.1']
    #allocation8 [shape = 'u8[32768]{0}', space=vmem, size = 0x8000, scoped, tag = 'output window, operand 0, single buffered']
    %8 = vsyncpa [#allocation4], 0
    %9 = vsyncpa [#allocation7], 0
    %10 = vsyncpa [#allocation5], 0
    // Predicated region
    $region2: #{tpu_custom_call.1} parent=1 // pred_check
      _
    $region3: #{tpu_custom_call.1} parent=1 // pred_check_branch
      %12 = sbr.rel (0) target = $region5
    $region4: #{tpu_custom_call.1} parent=1 // pred_region
      %s14 = ssub.s32 1024, 1024
      %15 = vsyncadd [#allocation4], %s14
      %s16 = sshll.u32 [#allocation3], 4
      %s17 = int_to_ptr.vmem [resolvable:$true] %s16
      %22 = dma.hbm_to_vmem [thread:$0]  %s0, 1024, %s17, [#allocation4], 128, 128, 8
    $region5: #{tpu_custom_call.1} parent=1 // pred_fallthru
      _
    // Predicated region
    $region6: #{tpu_custom_call.1} parent=1 // pred_check
      _
    $region7: #{tpu_custom_call.1} parent=1 // pred_check_branch
      %24 = sbr.rel (0) target = $region9
    $region8: #{tpu_custom_call.1} parent=1 // pred_region
      %s26 = ssub.s32 8192, 8192
      %27 = vsyncadd [#allocation7], %s26
      %s28 = sshll.u32 [#allocation6], 4
      %s29 = int_to_ptr.vmem [resolvable:$true] %s28
      %34 = dma.hbm_to_vmem [thread:$0]  %s1, 8192, %s29, [#allocation7], 128, 128, 8
    $region9: #{tpu_custom_call.1} parent=1 // pred_fallthru
      _
    // Predicated region
    $region10: #{tpu_custom_call.1} parent=1 // pred_check
      _
    $region11: #{tpu_custom_call.1} parent=1 // pred_check_branch
      %36 = sbr.rel (0) target = $region13
    $region12: #{tpu_custom_call.1} parent=1 // pred_region
      _
    $region13: #{tpu_custom_call.1} parent=1 // pred_fallthru
      _
    // Predicated region
    $region14: #{tpu_custom_call.1} parent=1 // pred_check
      _
    $region15: #{tpu_custom_call.1} parent=1 // pred_check_branch
      %38 = sbr.rel (0) target = $region17
    $region16: #{tpu_custom_call.1} parent=1 // pred_region
      %39 = dma.done [#allocation4], 1024
    $region17: #{tpu_custom_call.1} parent=1 // pred_fallthru
      _
    // Predicated region
    $region18: #{tpu_custom_call.1} parent=1 // pred_check
      _
    $region19: #{tpu_custom_call.1} parent=1 // pred_check_branch
      %41 = sbr.rel (0) target = $region21
    $region20: #{tpu_custom_call.1} parent=1 // pred_region
      %42 = dma.done [#allocation7], 8192
    $region21: #{tpu_custom_call.1} parent=1 // pred_fallthru
      _
    %p43 = scmp.eq.s32.totalorder 0, 0
    // Predicated region
    $region22: #{tpu_custom_call.1} parent=1 // pred_check
      %p44 = pneg %p43
    $region23: #{tpu_custom_call.1} parent=1 // pred_check_branch
      %46 = sbr.rel (%p44) target = $region25
    $region24: #{tpu_custom_call.1} parent=1 // pred_region
      %47 = vst [vmem:[#allocation2] sm:$0xff] 0.0
      %48 = vst [vmem:[#allocation2 + $0x8] sm:$0xff] 0.0
      %49 = vst [vmem:[#allocation2 + $0x10] sm:$0xff] 0.0
      %50 = vst [vmem:[#allocation2 + $0x18] sm:$0xff] 0.0
      %51 = vst [vmem:[#allocation2 + $0x20] sm:$0xff] 0.0
      %52 = vst [vmem:[#allocation2 + $0x28] sm:$0xff] 0.0
      %53 = vst [vmem:[#allocation2 + $0x30] sm:$0xff] 0.0
      %54 = vst [vmem:[#allocation2 + $0x38] sm:$0xff] 0.0
    $region25: #{tpu_custom_call.1} parent=1 // pred_fallthru
      _
    %v55 = vld [vmem:[#allocation3] sm:$0xff]
    %v56 = vld [vmem:[#allocation3 + $0x8] sm:$0xff]
    %s57 = scalar_lea.vmem [#allocation3], 16
    %v58 = vld [vmem:[%s57] sm:$0xff]
    %v59 = vld [vmem:[%s57 + $0x8] sm:$0xff]
    %s60 = scalar_lea.vmem [#allocation3], 32
    %v61 = vld [vmem:[%s60] sm:$0xff]
    %v62 = vld [vmem:[%s60 + $0x8] sm:$0xff]
    %s63 = scalar_lea.vmem [#allocation3], 48
    %v64 = vld [vmem:[%s63] sm:$0xff]
    %v65 = vld [vmem:[%s63 + $0x8] sm:$0xff]
    %v66 = vld [vmem:[#allocation6] sm:$0xff]
    %v67 = vld [vmem:[#allocation6 + $0x8] sm:$0xff]
    %v68 = vld [vmem:[#allocation6 + $0x10] sm:$0xff]
    %v69 = vld [vmem:[#allocation6 + $0x18] sm:$0xff]
    %v70 = vld [vmem:[#allocation6 + $0x20] sm:$0xff]
    %v71 = vld [vmem:[#allocation6 + $0x28] sm:$0xff]
    %v72 = vld [vmem:[#allocation6 + $0x30] sm:$0xff]
    %v73 = vld [vmem:[#allocation6 + $0x38] sm:$0xff]
    %v74 = vld [vmem:[#allocation6 + $0x40] sm:$0xff]
    %v75 = vld [vmem:[#allocation6 + $0x48] sm:$0xff]
    %v76 = vld [vmem:[#allocation6 + $0x50] sm:$0xff]
    %v77 = vld [vmem:[#allocation6 + $0x58] sm:$0xff]
    %v78 = vld [vmem:[#allocation6 + $0x60] sm:$0xff]
    %v79 = vld [vmem:[#allocation6 + $0x68] sm:$0xff]
    %v80 = vld [vmem:[#allocation6 + $0x70] sm:$0xff]
    %v81 = vld [vmem:[#allocation6 + $0x78] sm:$0xff]
    %s82 = scalar_lea.vmem [#allocation6], 128
    %v83 = vld [vmem:[%s82] sm:$0xff]
    %v84 = vld [vmem:[%s82 + $0x8] sm:$0xff]
    %v85 = vld [vmem:[%s82 + $0x10] sm:$0xff]
    %v86 = vld [vmem:[%s82 + $0x18] sm:$0xff]
    %v87 = vld [vmem:[%s82 + $0x20] sm:$0xff]
    %v88 = vld [vmem:[%s82 + $0x28] sm:$0xff]
    %v89 = vld [vmem:[%s82 + $0x30] sm:$0xff]
    %v90 = vld [vmem:[%s82 + $0x38] sm:$0xff]
    %v91 = vld [vmem:[%s82 + $0x40] sm:$0xff]
    %v92 = vld [vmem:[%s82 + $0x48] sm:$0xff]
    %v93 = vld [vmem:[%s82 + $0x50] sm:$0xff]
    %v94 = vld [vmem:[%s82 + $0x58] sm:$0xff]
    %v95 = vld [vmem:[%s82 + $0x60] sm:$0xff]
    %v96 = vld [vmem:[%s82 + $0x68] sm:$0xff]
    %v97 = vld [vmem:[%s82 + $0x70] sm:$0xff]
    %v98 = vld [vmem:[%s82 + $0x78] sm:$0xff]
    %s99 = scalar_lea.vmem [#allocation6], 256
    %v100 = vld [vmem:[%s99] sm:$0xff]
    %v101 = vld [vmem:[%s99 + $0x8] sm:$0xff]
    %v102 = vld [vmem:[%s99 + $0x10] sm:$0xff]
    %v103 = vld [vmem:[%s99 + $0x18] sm:$0xff]
    %v104 = vld [vmem:[%s99 + $0x20] sm:$0xff]
    %v105 = vld [vmem:[%s99 + $0x28] sm:$0xff]
    %v106 = vld [vmem:[%s99 + $0x30] sm:$0xff]
    %v107 = vld [vmem:[%s99 + $0x38] sm:$0xff]
    %v108 = vld [vmem:[%s99 + $0x40] sm:$0xff]
    %v109 = vld [vmem:[%s99 + $0x48] sm:$0xff]
    %v110 = vld [vmem:[%s99 + $0x50] sm:$0xff]
    %v111 = vld [vmem:[%s99 + $0x58] sm:$0xff]
    %v112 = vld [vmem:[%s99 + $0x60] sm:$0xff]
    %v113 = vld [vmem:[%s99 + $0x68] sm:$0xff]
    %v114 = vld [vmem:[%s99 + $0x70] sm:$0xff]
    %v115 = vld [vmem:[%s99 + $0x78] sm:$0xff]
    %s116 = scalar_lea.vmem [#allocation6], 384
    %v117 = vld [vmem:[%s116] sm:$0xff]
    %v118 = vld [vmem:[%s116 + $0x8] sm:$0xff]
    %v119 = vld [vmem:[%s116 + $0x10] sm:$0xff]
    %v120 = vld [vmem:[%s116 + $0x18] sm:$0xff]
    %v121 = vld [vmem:[%s116 + $0x20] sm:$0xff]
    %v122 = vld [vmem:[%s116 + $0x28] sm:$0xff]
    %v123 = vld [vmem:[%s116 + $0x30] sm:$0xff]
    %v124 = vld [vmem:[%s116 + $0x38] sm:$0xff]
    %v125 = vld [vmem:[%s116 + $0x40] sm:$0xff]
    %v126 = vld [vmem:[%s116 + $0x48] sm:$0xff]
    %v127 = vld [vmem:[%s116 + $0x50] sm:$0xff]
    %v128 = vld [vmem:[%s116 + $0x58] sm:$0xff]
    %v129 = vld [vmem:[%s116 + $0x60] sm:$0xff]
    %v130 = vld [vmem:[%s116 + $0x68] sm:$0xff]
    %v131 = vld [vmem:[%s116 + $0x70] sm:$0xff]
    %v132 = vld [vmem:[%s116 + $0x78] sm:$0xff]
    %v133 = vld [vmem:[#allocation2] sm:$0xff]
    %v134 = vld [vmem:[#allocation2 + $0x8] sm:$0xff]
    %135 = vmatprep.subr.mxu0 0.0
    %136 = vmatpush1.msra.mxu0 %v66
    %137 = vmatprep.subr.mxu0 0.0
    %138 = vmatpush1.msra.mxu0 %v67
    %139 = vmatprep.subr.mxu0 0.0
    %140 = vmatpush1.msra.mxu0 %v68
    %141 = vmatprep.subr.mxu0 0.0
    %142 = vmatpush1.msra.mxu0 %v69
    %143 = vmatprep.subr.mxu0 0.0
    %144 = vmatpush1.msra.mxu0 %v70
    %145 = vmatprep.subr.mxu0 0.0
    %146 = vmatpush1.msra.mxu0 %v71
    %147 = vmatprep.subr.mxu0 0.0
    %148 = vmatpush1.msra.mxu0 %v72
    %149 = vmatprep.subr.mxu0 0.0
    %150 = vmatpush1.msra.mxu0 %v73
    %151 = vmatprep.subr.mxu0 0.0
    %152 = vmatpush1.msra.mxu0 %v74
    %153 = vmatprep.subr.mxu0 0.0
    %154 = vmatpush1.msra.mxu0 %v75
    %155 = vmatprep.subr.mxu0 0.0
    %156 = vmatpush1.msra.mxu0 %v76
    %157 = vmatprep.subr.mxu0 0.0
    %158 = vmatpush1.msra.mxu0 %v77
    %159 = vmatprep.subr.mxu0 0.0
    %160 = vmatpush1.msra.mxu0 %v78
    %161 = vmatprep.subr.mxu0 0.0
    %162 = vmatpush1.msra.mxu0 %v79
    %163 = vmatprep.subr.mxu0 0.0
    %164 = vmatpush1.msra.mxu0 %v80
    %165 = vmatprep.subr.mxu0 0.0
    %166 = vmatpush1.msra.mxu0 %v81
    %167 = vmatprep.subr.mxu0 0.0
    %168 = vmatpush1.msra.mxu0 0.0
    %169 = vmatprep.subr.mxu0 0.0
    %170 = vmatpush1.msra.mxu0 0.0
    %171 = vmatprep.subr.mxu0 0.0
    %172 = vmatpush1.msra.mxu0 0.0
    %173 = vmatprep.subr.mxu0 0.0
    %174 = vmatpush1.msra.mxu0 0.0
    %175 = vmatprep.subr.mxu0 0.0
    %176 = vmatpush1.msra.mxu0 0.0
    %177 = vmatprep.subr.mxu0 0.0
    %178 = vmatpush1.msra.mxu0 0.0
    %179 = vmatprep.subr.mxu0 0.0
    %180 = vmatpush1.msra.mxu0 0.0
    %181 = vmatprep.subr.mxu0 0.0
    %182 = vmatpush1.msra.mxu0 0.0
    %183 = vmatprep.subr.mxu0 0.0
    %184 = vmatpush1.msra.mxu0 0.0
    %185 = vmatprep.subr.mxu0 0.0
    %186 = vmatpush1.msra.mxu0 0.0
    %187 = vmatprep.subr.mxu0 0.0
    %188 = vmatpush1.msra.mxu0 0.0
    %189 = vmatprep.subr.mxu0 0.0
    %190 = vmatpush1.msra.mxu0 0.0
    %191 = vmatprep.subr.mxu0 0.0
    %192 = vmatpush1.msra.mxu0 0.0
    %193 = vmatprep.subr.mxu0 0.0
    %194 = vmatpush1.msra.mxu0 0.0
    %195 = vmatprep.subr.mxu0 0.0
    %196 = vmatpush1.msra.mxu0 0.0
    %197 = vmatprep.subr.mxu0 0.0
    %198 = vmatpush1.msra.mxu0 0.0
    %199 = vmatprep.mubr.f32.mxu0 0.0
    %200 = vmatmul.mubr.f32.gmra.mrb[0].mxu0 %v55
    %v201 = vpop.f32.mrb[0].mxu0
    %v202 = vadd.f32 0.0, %v201
    %v203 = vpop.f32.mrb[0].mxu0
    %204 = vmatprep.mubr.f32.mxu0 0.0
    %205 = vmatmul.mubr.f32.gmra.mrb[0].mxu0 %v56
    %v206 = vpop.f32.mrb[0].mxu0
    %v207 = vadd.f32 0.0, %v206
    %v208 = vpop.f32.mrb[0].mxu0
    %209 = vdwg.mxu0
    %210 = vmatprep.subr.mxu0 0.0
    %211 = vmatpush1.msra.mxu0 %v83
    %212 = vmatprep.subr.mxu0 0.0
    %213 = vmatpush1.msra.mxu0 %v84
    %214 = vmatprep.subr.mxu0 0.0
    %215 = vmatpush1.msra.mxu0 %v85
    %216 = vmatprep.subr.mxu0 0.0
    %217 = vmatpush1.msra.mxu0 %v86
    %218 = vmatprep.subr.mxu0 0.0
    %219 = vmatpush1.msra.mxu0 %v87
    %220 = vmatprep.subr.mxu0 0.0
    %221 = vmatpush1.msra.mxu0 %v88
    %222 = vmatprep.subr.mxu0 0.0
    %223 = vmatpush1.msra.mxu0 %v89
    %224 = vmatprep.subr.mxu0 0.0
    %225 = vmatpush1.msra.mxu0 %v90
    %226 = vmatprep.subr.mxu0 0.0
    %227 = vmatpush1.msra.mxu0 %v91
    %228 = vmatprep.subr.mxu0 0.0
    %229 = vmatpush1.msra.mxu0 %v92
    %230 = vmatprep.subr.mxu0 0.0
    %231 = vmatpush1.msra.mxu0 %v93
    %232 = vmatprep.subr.mxu0 0.0
    %233 = vmatpush1.msra.mxu0 %v94
    %234 = vmatprep.subr.mxu0 0.0
    %235 = vmatpush1.msra.mxu0 %v95
    %236 = vmatprep.subr.mxu0 0.0
    %237 = vmatpush1.msra.mxu0 %v96
    %238 = vmatprep.subr.mxu0 0.0
    %239 = vmatpush1.msra.mxu0 %v97
    %240 = vmatprep.subr.mxu0 0.0
    %241 = vmatpush1.msra.mxu0 %v98
    %242 = vmatprep.subr.mxu0 0.0
    %243 = vmatpush1.msra.mxu0 0.0
    %244 = vmatprep.subr.mxu0 0.0
    %245 = vmatpush1.msra.mxu0 0.0
    %246 = vmatprep.subr.mxu0 0.0
    %247 = vmatpush1.msra.mxu0 0.0
    %248 = vmatprep.subr.mxu0 0.0
    %249 = vmatpush1.msra.mxu0 0.0
    %250 = vmatprep.subr.mxu0 0.0
    %251 = vmatpush1.msra.mxu0 0.0
    %252 = vmatprep.subr.mxu0 0.0
    %253 = vmatpush1.msra.mxu0 0.0
    %254 = vmatprep.subr.mxu0 0.0
    %255 = vmatpush1.msra.mxu0 0.0
    %256 = vmatprep.subr.mxu0 0.0
    %257 = vmatpush1.msra.mxu0 0.0
    %258 = vmatprep.subr.mxu0 0.0
    %259 = vmatpush1.msra.mxu0 0.0
    %260 = vmatprep.subr.mxu0 0.0
    %261 = vmatpush1.msra.mxu0 0.0
    %262 = vmatprep.subr.mxu0 0.0
    %263 = vmatpush1.msra.mxu0 0.0
    %264 = vmatprep.subr.mxu0 0.0
    %265 = vmatpush1.msra.mxu0 0.0
    %266 = vmatprep.subr.mxu0 0.0
    %267 = vmatpush1.msra.mxu0 0.0
    %268 = vmatprep.subr.mxu0 0.0
    %269 = vmatpush1.msra.mxu0 0.0
    %270 = vmatprep.subr.mxu0 0.0
    %271 = vmatpush1.msra.mxu0 0.0
    %272 = vmatprep.subr.mxu0 0.0
    %273 = vmatpush1.msra.mxu0 0.0
    %274 = vmatprep.mubr.f32.mxu0 0.0
    %275 = vmatmul.mubr.f32.gmra.mrb[0].mxu0 %v58
    %v276 = vpop.f32.mrb[0].mxu0
    %v277 = vadd.f32 0.0, %v276
    %v278 = vpop.f32.mrb[0].mxu0
    %279 = vmatprep.mubr.f32.mxu0 0.0
    %280 = vmatmul.mubr.f32.gmra.mrb[0].mxu0 %v59
    %v281 = vpop.f32.mrb[0].mxu0
    %v282 = vadd.f32 0.0, %v281
    %v283 = vpop.f32.mrb[0].mxu0
    %284 = vdwg.mxu0
    %v285 = vsub.f32 %v202, %v277
    %v286 = vsub.f32 %v207, %v282
    %287 = vmatprep.subr.mxu0 0.0
    %288 = vmatpush1.msra.mxu0 %v100
    %289 = vmatprep.subr.mxu0 0.0
    %290 = vmatpush1.msra.mxu0 %v101
    %291 = vmatprep.subr.mxu0 0.0
    %292 = vmatpush1.msra.mxu0 %v102
    %293 = vmatprep.subr.mxu0 0.0
    %294 = vmatpush1.msra.mxu0 %v103
    %295 = vmatprep.subr.mxu0 0.0
    %296 = vmatpush1.msra.mxu0 %v104
    %297 = vmatprep.subr.mxu0 0.0
    %298 = vmatpush1.msra.mxu0 %v105
    %299 = vmatprep.subr.mxu0 0.0
    %300 = vmatpush1.msra.mxu0 %v106
    %301 = vmatprep.subr.mxu0 0.0
    %302 = vmatpush1.msra.mxu0 %v107
    %303 = vmatprep.subr.mxu0 0.0
    %304 = vmatpush1.msra.mxu0 %v108
    %305 = vmatprep.subr.mxu0 0.0
    %306 = vmatpush1.msra.mxu0 %v109
    %307 = vmatprep.subr.mxu0 0.0
    %308 = vmatpush1.msra.mxu0 %v110
    %309 = vmatprep.subr.mxu0 0.0
    %310 = vmatpush1.msra.mxu0 %v111
    %311 = vmatprep.subr.mxu0 0.0
    %312 = vmatpush1.msra.mxu0 %v112
    %313 = vmatprep.subr.mxu0 0.0
    %314 = vmatpush1.msra.mxu0 %v113
    %315 = vmatprep.subr.mxu0 0.0
    %316 = vmatpush1.msra.mxu0 %v114
    %317 = vmatprep.subr.mxu0 0.0
    %318 = vmatpush1.msra.mxu0 %v115
    %319 = vmatprep.subr.mxu0 0.0
    %320 = vmatpush1.msra.mxu0 0.0
    %321 = vmatprep.subr.mxu0 0.0
    %322 = vmatpush1.msra.mxu0 0.0
    %323 = vmatprep.subr.mxu0 0.0
    %324 = vmatpush1.msra.mxu0 0.0
    %325 = vmatprep.subr.mxu0 0.0
    %326 = vmatpush1.msra.mxu0 0.0
    %327 = vmatprep.subr.mxu0 0.0
    %328 = vmatpush1.msra.mxu0 0.0
    %329 = vmatprep.subr.mxu0 0.0
    %330 = vmatpush1.msra.mxu0 0.0
    %331 = vmatprep.subr.mxu0 0.0
    %332 = vmatpush1.msra.mxu0 0.0
    %333 = vmatprep.subr.mxu0 0.0
    %334 = vmatpush1.msra.mxu0 0.0
    %335 = vmatprep.subr.mxu0 0.0
    %336 = vmatpush1.msra.mxu0 0.0
    %337 = vmatprep.subr.mxu0 0.0
    %338 = vmatpush1.msra.mxu0 0.0
    %339 = vmatprep.subr.mxu0 0.0
    %340 = vmatpush1.msra.mxu0 0.0
    %341 = vmatprep.subr.mxu0 0.0
    %342 = vmatpush1.msra.mxu0 0.0
    %343 = vmatprep.subr.mxu0 0.0
    %344 = vmatpush1.msra.mxu0 0.0
    %345 = vmatprep.subr.mxu0 0.0
    %346 = vmatpush1.msra.mxu0 0.0
    %347 = vmatprep.subr.mxu0 0.0
    %348 = vmatpush1.msra.mxu0 0.0
    %349 = vmatprep.subr.mxu0 0.0
    %350 = vmatpush1.msra.mxu0 0.0
    %351 = vmatprep.mubr.f32.mxu0 0.0
    %352 = vmatmul.mubr.f32.gmra.mrb[0].mxu0 %v61
    %v353 = vpop.f32.mrb[0].mxu0
    %v354 = vadd.f32 0.0, %v353
    %v355 = vpop.f32.mrb[0].mxu0
    %356 = vmatprep.mubr.f32.mxu0 0.0
    %357 = vmatmul.mubr.f32.gmra.mrb[0].mxu0 %v62
    %v358 = vpop.f32.mrb[0].mxu0
    %v359 = vadd.f32 0.0, %v358
    %v360 = vpop.f32.mrb[0].mxu0
    %361 = vdwg.mxu0
    %v362 = vsub.f32 %v285, %v354
    %v363 = vsub.f32 %v286, %v359
    %364 = vmatprep.subr.mxu0 0.0
    %365 = vmatpush1.msra.mxu0 %v117
    %366 = vmatprep.subr.mxu0 0.0
    %367 = vmatpush1.msra.mxu0 %v118
    %368 = vmatprep.subr.mxu0 0.0
    %369 = vmatpush1.msra.mxu0 %v119
    %370 = vmatprep.subr.mxu0 0.0
    %371 = vmatpush1.msra.mxu0 %v120
    %372 = vmatprep.subr.mxu0 0.0
    %373 = vmatpush1.msra.mxu0 %v121
    %374 = vmatprep.subr.mxu0 0.0
    %375 = vmatpush1.msra.mxu0 %v122
    %376 = vmatprep.subr.mxu0 0.0
    %377 = vmatpush1.msra.mxu0 %v123
    %378 = vmatprep.subr.mxu0 0.0
    %379 = vmatpush1.msra.mxu0 %v124
    %380 = vmatprep.subr.mxu0 0.0
    %381 = vmatpush1.msra.mxu0 %v125
    %382 = vmatprep.subr.mxu0 0.0
    %383 = vmatpush1.msra.mxu0 %v126
    %384 = vmatprep.subr.mxu0 0.0
    %385 = vmatpush1.msra.mxu0 %v127
    %386 = vmatprep.subr.mxu0 0.0
    %387 = vmatpush1.msra.mxu0 %v128
    %388 = vmatprep.subr.mxu0 0.0
    %389 = vmatpush1.msra.mxu0 %v129
    %390 = vmatprep.subr.mxu0 0.0
    %391 = vmatpush1.msra.mxu0 %v130
    %392 = vmatprep.subr.mxu0 0.0
    %393 = vmatpush1.msra.mxu0 %v131
    %394 = vmatprep.subr.mxu0 0.0
    %395 = vmatpush1.msra.mxu0 %v132
    %396 = vmatprep.subr.mxu0 0.0
    %397 = vmatpush1.msra.mxu0 0.0
    %398 = vmatprep.subr.mxu0 0.0
    %399 = vmatpush1.msra.mxu0 0.0
    %400 = vmatprep.subr.mxu0 0.0
    %401 = vmatpush1.msra.mxu0 0.0
    %402 = vmatprep.subr.mxu0 0.0
    %403 = vmatpush1.msra.mxu0 0.0
    %404 = vmatprep.subr.mxu0 0.0
    %405 = vmatpush1.msra.mxu0 0.0
    %406 = vmatprep.subr.mxu0 0.0
    %407 = vmatpush1.msra.mxu0 0.0
    %408 = vmatprep.subr.mxu0 0.0
    %409 = vmatpush1.msra.mxu0 0.0
    %410 = vmatprep.subr.mxu0 0.0
    %411 = vmatpush1.msra.mxu0 0.0
    %412 = vmatprep.subr.mxu0 0.0
    %413 = vmatpush1.msra.mxu0 0.0
    %414 = vmatprep.subr.mxu0 0.0
    %415 = vmatpush1.msra.mxu0 0.0
    %416 = vmatprep.subr.mxu0 0.0
    %417 = vmatpush1.msra.mxu0 0.0
    %418 = vmatprep.subr.mxu0 0.0
    %419 = vmatpush1.msra.mxu0 0.0
    %420 = vmatprep.subr.mxu0 0.0
    %421 = vmatpush1.msra.mxu0 0.0
    %422 = vmatprep.subr.mxu0 0.0
    %423 = vmatpush1.msra.mxu0 0.0
    %424 = vmatprep.subr.mxu0 0.0
    %425 = vmatpush1.msra.mxu0 0.0
    %426 = vmatprep.subr.mxu0 0.0
    %427 = vmatpush1.msra.mxu0 0.0
    %428 = vmatprep.mubr.f32.mxu0 0.0
    %429 = vmatmul.mubr.f32.gmra.mrb[0].mxu0 %v64
    %v430 = vpop.f32.mrb[0].mxu0
    %v431 = vadd.f32 0.0, %v430
    %v432 = vpop.f32.mrb[0].mxu0
    %433 = vmatprep.mubr.f32.mxu0 0.0
    %434 = vmatmul.mubr.f32.gmra.mrb[0].mxu0 %v65
    %v435 = vpop.f32.mrb[0].mxu0
    %v436 = vadd.f32 0.0, %v435
    %v437 = vpop.f32.mrb[0].mxu0
    %438 = vdwg.mxu0
    %v439 = vsub.f32 %v362, %v431
    %v440 = vsub.f32 %v363, %v436
    %v441 = vadd.f32 %v133, %v439
    %v442 = vadd.f32 %v134, %v440
    %443 = vst [vmem:[#allocation2] sm:$0xff] %v441
    %444 = vst [vmem:[#allocation2 + $0x8] sm:$0xff] %v442
    %s445 = scalar_lea.vmem [#allocation2], 16
    %v446 = vld [vmem:[%s445] sm:$0xff]
    %v447 = vld [vmem:[%s445 + $0x8] sm:$0xff]
    %448 = vmatprep.subr.mxu0 0.0
    %449 = vmatpush1.msra.mxu0 %v66
    %450 = vmatprep.subr.mxu0 0.0
    %451 = vmatpush1.msra.mxu0 %v67
    %452 = vmatprep.subr.mxu0 0.0
    %453 = vmatpush1.msra.mxu0 %v68
    %454 = vmatprep.subr.mxu0 0.0
    %455 = vmatpush1.msra.mxu0 %v69
    %456 = vmatprep.subr.mxu0 0.0
    %457 = vmatpush1.msra.mxu0 %v70
    %458 = vmatprep.subr.mxu0 0.0
    %459 = vmatpush1.msra.mxu0 %v71
    %460 = vmatprep.subr.mxu0 0.0
    %461 = vmatpush1.msra.mxu0 %v72
    %462 = vmatprep.subr.mxu0 0.0
    %463 = vmatpush1.msra.mxu0 %v73
    %464 = vmatprep.subr.mxu0 0.0
    %465 = vmatpush1.msra.mxu0 %v74
    %466 = vmatprep.subr.mxu0 0.0
    %467 = vmatpush1.msra.mxu0 %v75
    %468 = vmatprep.subr.mxu0 0.0
    %469 = vmatpush1.msra.mxu0 %v76
    %470 = vmatprep.subr.mxu0 0.0
    %471 = vmatpush1.msra.mxu0 %v77
    %472 = vmatprep.subr.mxu0 0.0
    %473 = vmatpush1.msra.mxu0 %v78
    %474 = vmatprep.subr.mxu0 0.0
    %475 = vmatpush1.msra.mxu0 %v79
    %476 = vmatprep.subr.mxu0 0.0
    %477 = vmatpush1.msra.mxu0 %v80
    %478 = vmatprep.subr.mxu0 0.0
    %479 = vmatpush1.msra.mxu0 %v81
    %480 = vmatprep.subr.mxu0 0.0
    %481 = vmatpush1.msra.mxu0 0.0
    %482 = vmatprep.subr.mxu0 0.0
    %483 = vmatpush1.msra.mxu0 0.0
    %484 = vmatprep.subr.mxu0 0.0
    %485 = vmatpush1.msra.mxu0 0.0
    %486 = vmatprep.subr.mxu0 0.0
    %487 = vmatpush1.msra.mxu0 0.0
    %488 = vmatprep.subr.mxu0 0.0
    %489 = vmatpush1.msra.mxu0 0.0
    %490 = vmatprep.subr.mxu0 0.0
    %491 = vmatpush1.msra.mxu0 0.0
    %492 = vmatprep.subr.mxu0 0.0
    %493 = vmatpush1.msra.mxu0 0.0
    %494 = vmatprep.subr.mxu0 0.0
    %495 = vmatpush1.msra.mxu0 0.0
    %496 = vmatprep.subr.mxu0 0.0
    %497 = vmatpush1.msra.mxu0 0.0
    %498 = vmatprep.subr.mxu0 0.0
    %499 = vmatpush1.msra.mxu0 0.0
    %500 = vmatprep.subr.mxu0 0.0
    %501 = vmatpush1.msra.mxu0 0.0
    %502 = vmatprep.subr.mxu0 0.0
    %503 = vmatpush1.msra.mxu0 0.0
    %504 = vmatprep.subr.mxu0 0.0
    %505 = vmatpush1.msra.mxu0 0.0
    %506 = vmatprep.subr.mxu0 0.0
    %507 = vmatpush1.msra.mxu0 0.0
    %508 = vmatprep.subr.mxu0 0.0
    %509 = vmatpush1.msra.mxu0 0.0
    %510 = vmatprep.subr.mxu0 0.0
    %511 = vmatpush1.msra.mxu0 0.0
    %512 = vmatprep.mubr.f32.mxu0 0.0
    %513 = vmatmul.mubr.f32.gmra.mrb[0].mxu0 %v58
    %v514 = vpop.f32.mrb[0].mxu0
    %v515 = vadd.f32 0.0, %v514
    %v516 = vpop.f32.mrb[0].mxu0
    %517 = vmatprep.mubr.f32.mxu0 0.0
    %518 = vmatmul.mubr.f32.gmra.mrb[0].mxu0 %v59
    %v519 = vpop.f32.mrb[0].mxu0
    %v520 = vadd.f32 0.0, %v519
    %v521 = vpop.f32.mrb[0].mxu0
    %522 = vdwg.mxu0
    %523 = vmatprep.subr.mxu0 0.0
    %524 = vmatpush1.msra.mxu0 %v83
    %525 = vmatprep.subr.mxu0 0.0
    %526 = vmatpush1.msra.mxu0 %v84
    %527 = vmatprep.subr.mxu0 0.0
    %528 = vmatpush1.msra.mxu0 %v85
    %529 = vmatprep.subr.mxu0 0.0
    %530 = vmatpush1.msra.mxu0 %v86
    %531 = vmatprep.subr.mxu0 0.0
    %532 = vmatpush1.msra.mxu0 %v87
    %533 = vmatprep.subr.mxu0 0.0
    %534 = vmatpush1.msra.mxu0 %v88
    %535 = vmatprep.subr.mxu0 0.0
    %536 = vmatpush1.msra.mxu0 %v89
    %537 = vmatprep.subr.mxu0 0.0
    %538 = vmatpush1.msra.mxu0 %v90
    %539 = vmatprep.subr.mxu0 0.0
    %540 = vmatpush1.msra.mxu0 %v91
    %541 = vmatprep.subr.mxu0 0.0
    %542 = vmatpush1.msra.mxu0 %v92
    %543 = vmatprep.subr.mxu0 0.0
    %544 = vmatpush1.msra.mxu0 %v93
    %545 = vmatprep.subr.mxu0 0.0
    %546 = vmatpush1.msra.mxu0 %v94
    %547 = vmatprep.subr.mxu0 0.0
    %548 = vmatpush1.msra.mxu0 %v95
    %549 = vmatprep.subr.mxu0 0.0
    %550 = vmatpush1.msra.mxu0 %v96
    %551 = vmatprep.subr.mxu0 0.0
    %552 = vmatpush1.msra.mxu0 %v97
    %553 = vmatprep.subr.mxu0 0.0
    %554 = vmatpush1.msra.mxu0 %v98
    %555 = vmatprep.subr.mxu0 0.0
    %556 = vmatpush1.msra.mxu0 0.0
    %557 = vmatprep.subr.mxu0 0.0
    %558 = vmatpush1.msra.mxu0 0.0
    %559 = vmatprep.subr.mxu0 0.0
    %560 = vmatpush1.msra.mxu0 0.0
    %561 = vmatprep.subr.mxu0 0.0
    %562 = vmatpush1.msra.mxu0 0.0
    %563 = vmatprep.subr.mxu0 0.0
    %564 = vmatpush1.msra.mxu0 0.0
    %565 = vmatprep.subr.mxu0 0.0
    %566 = vmatpush1.msra.mxu0 0.0
    %567 = vmatprep.subr.mxu0 0.0
    %568 = vmatpush1.msra.mxu0 0.0
    %569 = vmatprep.subr.mxu0 0.0
    %570 = vmatpush1.msra.mxu0 0.0
    %571 = vmatprep.subr.mxu0 0.0
    %572 = vmatpush1.msra.mxu0 0.0
    %573 = vmatprep.subr.mxu0 0.0
    %574 = vmatpush1.msra.mxu0 0.0
    %575 = vmatprep.subr.mxu0 0.0
    %576 = vmatpush1.msra.mxu0 0.0
    %577 = vmatprep.subr.mxu0 0.0
    %578 = vmatpush1.msra.mxu0 0.0
    %579 = vmatprep.subr.mxu0 0.0
    %580 = vmatpush1.msra.mxu0 0.0
    %581 = vmatprep.subr.mxu0 0.0
    %582 = vmatpush1.msra.mxu0 0.0
    %583 = vmatprep.subr.mxu0 0.0
    %584 = vmatpush1.msra.mxu0 0.0
    %585 = vmatprep.subr.mxu0 0.0
    %586 = vmatpush1.msra.mxu0 0.0
    %587 = vmatprep.mubr.f32.mxu0 0.0
    %588 = vmatmul.mubr.f32.gmra.mrb[0].mxu0 %v55
    %v589 = vpop.f32.mrb[0].mxu0
    %v590 = vadd.f32 %v515, %v589
    %v591 = vpop.f32.mrb[0].mxu0
    %592 = vmatprep.mubr.f32.mxu0 0.0
    %593 = vmatmul.mubr.f32.gmra.mrb[0].mxu0 %v56
    %v594 = vpop.f32.mrb[0].mxu0
    %v595 = vadd.f32 %v520, %v594
    %v596 = vpop.f32.mrb[0].mxu0
    %597 = vdwg.mxu0
    %598 = vmatprep.subr.mxu0 0.0
    %599 = vmatpush1.msra.mxu0 %v117
    %600 = vmatprep.subr.mxu0 0.0
    %601 = vmatpush1.msra.mxu0 %v118
    %602 = vmatprep.subr.mxu0 0.0
    %603 = vmatpush1.msra.mxu0 %v119
    %604 = vmatprep.subr.mxu0 0.0
    %605 = vmatpush1.msra.mxu0 %v120
    %606 = vmatprep.subr.mxu0 0.0
    %607 = vmatpush1.msra.mxu0 %v121
    %608 = vmatprep.subr.mxu0 0.0
    %609 = vmatpush1.msra.mxu0 %v122
    %610 = vmatprep.subr.mxu0 0.0
    %611 = vmatpush1.msra.mxu0 %v123
    %612 = vmatprep.subr.mxu0 0.0
    %613 = vmatpush1.msra.mxu0 %v124
    %614 = vmatprep.subr.mxu0 0.0
    %615 = vmatpush1.msra.mxu0 %v125
    %616 = vmatprep.subr.mxu0 0.0
    %617 = vmatpush1.msra.mxu0 %v126
    %618 = vmatprep.subr.mxu0 0.0
    %619 = vmatpush1.msra.mxu0 %v127
    %620 = vmatprep.subr.mxu0 0.0
    %621 = vmatpush1.msra.mxu0 %v128
    %622 = vmatprep.subr.mxu0 0.0
    %623 = vmatpush1.msra.mxu0 %v129
    %624 = vmatprep.subr.mxu0 0.0
    %625 = vmatpush1.msra.mxu0 %v130
    %626 = vmatprep.subr.mxu0 0.0
    %627 = vmatpush1.msra.mxu0 %v131
    %628 = vmatprep.subr.mxu0 0.0
    %629 = vmatpush1.msra.mxu0 %v132
    %630 = vmatprep.subr.mxu0 0.0
    %631 = vmatpush1.msra.mxu0 0.0
    %632 = vmatprep.subr.mxu0 0.0
    %633 = vmatpush1.msra.mxu0 0.0
    %634 = vmatprep.subr.mxu0 0.0
    %635 = vmatpush1.msra.mxu0 0.0
    %636 = vmatprep.subr.mxu0 0.0
    %637 = vmatpush1.msra.mxu0 0.0
    %638 = vmatprep.subr.mxu0 0.0
    %639 = vmatpush1.msra.mxu0 0.0
    %640 = vmatprep.subr.mxu0 0.0
    %641 = vmatpush1.msra.mxu0 0.0
    %642 = vmatprep.subr.mxu0 0.0
    %643 = vmatpush1.msra.mxu0 0.0
    %644 = vmatprep.subr.mxu0 0.0
    %645 = vmatpush1.msra.mxu0 0.0
    %646 = vmatprep.subr.mxu0 0.0
    %647 = vmatpush1.msra.mxu0 0.0
    %648 = vmatprep.subr.mxu0 0.0
    %649 = vmatpush1.msra.mxu0 0.0
    %650 = vmatprep.subr.mxu0 0.0
    %651 = vmatpush1.msra.mxu0 0.0
    %652 = vmatprep.subr.mxu0 0.0
    %653 = vmatpush1.msra.mxu0 0.0
    %654 = vmatprep.subr.mxu0 0.0
    %655 = vmatpush1.msra.mxu0 0.0
    %656 = vmatprep.subr.mxu0 0.0
    %657 = vmatpush1.msra.mxu0 0.0
    %658 = vmatprep.subr.mxu0 0.0
    %659 = vmatpush1.msra.mxu0 0.0
    %660 = vmatprep.subr.mxu0 0.0
    %661 = vmatpush1.msra.mxu0 0.0
    %662 = vmatprep.mubr.f32.mxu0 0.0
    %663 = vmatmul.mubr.f32.gmra.mrb[0].mxu0 %v61
    %v664 = vpop.f32.mrb[0].mxu0
    %v665 = vadd.f32 0.0, %v664
    %v666 = vpop.f32.mrb[0].mxu0
    %667 = vmatprep.mubr.f32.mxu0 0.0
    %668 = vmatmul.mubr.f32.gmra.mrb[0].mxu0 %v62
    %v669 = vpop.f32.mrb[0].mxu0
    %v670 = vadd.f32 0.0, %v669
    %v671 = vpop.f32.mrb[0].mxu0
    %672 = vdwg.mxu0
    %v673 = vadd.f32 %v590, %v665
    %v674 = vadd.f32 %v595, %v670
    %675 = vmatprep.subr.mxu0 0.0
    %676 = vmatpush1.msra.mxu0 %v100
    %677 = vmatprep.subr.mxu0 0.0
    %678 = vmatpush1.msra.mxu0 %v101
    %679 = vmatprep.subr.mxu0 0.0
    %680 = vmatpush1.msra.mxu0 %v102
    %681 = vmatprep.subr.mxu0 0.0
    %682 = vmatpush1.msra.mxu0 %v103
    %683 = vmatprep.subr.mxu0 0.0
    %684 = vmatpush1.msra.mxu0 %v104
    %685 = vmatprep.subr.mxu0 0.0
    %686 = vmatpush1.msra.mxu0 %v105
    %687 = vmatprep.subr.mxu0 0.0
    %688 = vmatpush1.msra.mxu0 %v106
    %689 = vmatprep.subr.mxu0 0.0
    %690 = vmatpush1.msra.mxu0 %v107
    %691 = vmatprep.subr.mxu0 0.0
    %692 = vmatpush1.msra.mxu0 %v108
    %693 = vmatprep.subr.mxu0 0.0
    %694 = vmatpush1.msra.mxu0 %v109
    %695 = vmatprep.subr.mxu0 0.0
    %696 = vmatpush1.msra.mxu0 %v110
    %697 = vmatprep.subr.mxu0 0.0
    %698 = vmatpush1.msra.mxu0 %v111
    %699 = vmatprep.subr.mxu0 0.0
    %700 = vmatpush1.msra.mxu0 %v112
    %701 = vmatprep.subr.mxu0 0.0
    %702 = vmatpush1.msra.mxu0 %v113
    %703 = vmatprep.subr.mxu0 0.0
    %704 = vmatpush1.msra.mxu0 %v114
    %705 = vmatprep.subr.mxu0 0.0
    %706 = vmatpush1.msra.mxu0 %v115
    %707 = vmatprep.subr.mxu0 0.0
    %708 = vmatpush1.msra.mxu0 0.0
    %709 = vmatprep.subr.mxu0 0.0
    %710 = vmatpush1.msra.mxu0 0.0
    %711 = vmatprep.subr.mxu0 0.0
    %712 = vmatpush1.msra.mxu0 0.0
    %713 = vmatprep.subr.mxu0 0.0
    %714 = vmatpush1.msra.mxu0 0.0
    %715 = vmatprep.subr.mxu0 0.0
    %716 = vmatpush1.msra.mxu0 0.0
    %717 = vmatprep.subr.mxu0 0.0
    %718 = vmatpush1.msra.mxu0 0.0
    %719 = vmatprep.subr.mxu0 0.0
    %720 = vmatpush1.msra.mxu0 0.0
    %721 = vmatprep.subr.mxu0 0.0
    %722 = vmatpush1.msra.mxu0 0.0
    %723 = vmatprep.subr.mxu0 0.0
    %724 = vmatpush1.msra.mxu0 0.0
    %725 = vmatprep.subr.mxu0 0.0
    %726 = vmatpush1.msra.mxu0 0.0
    %727 = vmatprep.subr.mxu0 0.0
    %728 = vmatpush1.msra.mxu0 0.0
    %729 = vmatprep.subr.mxu0 0.0
    %730 = vmatpush1.msra.mxu0 0.0
    %731 = vmatprep.subr.mxu0 0.0
    %732 = vmatpush1.msra.mxu0 0.0
    %733 = vmatprep.subr.mxu0 0.0
    %734 = vmatpush1.msra.mxu0 0.0
    %735 = vmatprep.subr.mxu0 0.0
    %736 = vmatpush1.msra.mxu0 0.0
    %737 = vmatprep.subr.mxu0 0.0
    %738 = vmatpush1.msra.mxu0 0.0
    %739 = vmatprep.mubr.f32.mxu0 0.0
    %740 = vmatmul.mubr.f32.gmra.mrb[0].mxu0 %v64
    %v741 = vpop.f32.mrb[0].mxu0
    %v742 = vadd.f32 0.0, %v741
    %v743 = vpop.f32.mrb[0].mxu0
    %744 = vmatprep.mubr.f32.mxu0 0.0
    %745 = vmatmul.mubr.f32.gmra.mrb[0].mxu0 %v65
    %v746 = vpop.f32.mrb[0].mxu0
    %v747 = vadd.f32 0.0, %v746
    %v748 = vpop.f32.mrb[0].mxu0
    %749 = vdwg.mxu0
    %v750 = vsub.f32 %v673, %v742
    %v751 = vsub.f32 %v674, %v747
    %v752 = vadd.f32 %v446, %v750
    %v753 = vadd.f32 %v447, %v751
    %754 = vst [vmem:[%s445] sm:$0xff] %v752
    %755 = vst [vmem:[%s445 + $0x8] sm:$0xff] %v753
    %s756 = scalar_lea.vmem [#allocation2], 32
    %v757 = vld [vmem:[%s756] sm:$0xff]
    %v758 = vld [vmem:[%s756 + $0x8] sm:$0xff]
    %759 = vmatprep.subr.mxu0 0.0
    %760 = vmatpush1.msra.mxu0 %v100
    %761 = vmatprep.subr.mxu0 0.0
    %762 = vmatpush1.msra.mxu0 %v101
    %763 = vmatprep.subr.mxu0 0.0
    %764 = vmatpush1.msra.mxu0 %v102
    %765 = vmatprep.subr.mxu0 0.0
    %766 = vmatpush1.msra.mxu0 %v103
    %767 = vmatprep.subr.mxu0 0.0
    %768 = vmatpush1.msra.mxu0 %v104
    %769 = vmatprep.subr.mxu0 0.0
    %770 = vmatpush1.msra.mxu0 %v105
    %771 = vmatprep.subr.mxu0 0.0
    %772 = vmatpush1.msra.mxu0 %v106
    %773 = vmatprep.subr.mxu0 0.0
    %774 = vmatpush1.msra.mxu0 %v107
    %775 = vmatprep.subr.mxu0 0.0
    %776 = vmatpush1.msra.mxu0 %v108
    %777 = vmatprep.subr.mxu0 0.0
    %778 = vmatpush1.msra.mxu0 %v109
    %779 = vmatprep.subr.mxu0 0.0
    %780 = vmatpush1.msra.mxu0 %v110
    %781 = vmatprep.subr.mxu0 0.0
    %782 = vmatpush1.msra.mxu0 %v111
    %783 = vmatprep.subr.mxu0 0.0
    %784 = vmatpush1.msra.mxu0 %v112
    %785 = vmatprep.subr.mxu0 0.0
    %786 = vmatpush1.msra.mxu0 %v113
    %787 = vmatprep.subr.mxu0 0.0
    %788 = vmatpush1.msra.mxu0 %v114
    %789 = vmatprep.subr.mxu0 0.0
    %790 = vmatpush1.msra.mxu0 %v115
    %791 = vmatprep.subr.mxu0 0.0
    %792 = vmatpush1.msra.mxu0 0.0
    %793 = vmatprep.subr.mxu0 0.0
    %794 = vmatpush1.msra.mxu0 0.0
    %795 = vmatprep.subr.mxu0 0.0
    %796 = vmatpush1.msra.mxu0 0.0
    %797 = vmatprep.subr.mxu0 0.0
    %798 = vmatpush1.msra.mxu0 0.0
    %799 = vmatprep.subr.mxu0 0.0
    %800 = vmatpush1.msra.mxu0 0.0
    %801 = vmatprep.subr.mxu0 0.0
    %802 = vmatpush1.msra.mxu0 0.0
    %803 = vmatprep.subr.mxu0 0.0
    %804 = vmatpush1.msra.mxu0 0.0
    %805 = vmatprep.subr.mxu0 0.0
    %806 = vmatpush1.msra.mxu0 0.0
    %807 = vmatprep.subr.mxu0 0.0
    %808 = vmatpush1.msra.mxu0 0.0
    %809 = vmatprep.subr.mxu0 0.0
    %810 = vmatpush1.msra.mxu0 0.0
    %811 = vmatprep.subr.mxu0 0.0
    %812 = vmatpush1.msra.mxu0 0.0
    %813 = vmatprep.subr.mxu0 0.0
    %814 = vmatpush1.msra.mxu0 0.0
    %815 = vmatprep.subr.mxu0 0.0
    %816 = vmatpush1.msra.mxu0 0.0
    %817 = vmatprep.subr.mxu0 0.0
    %818 = vmatpush1.msra.mxu0 0.0
    %819 = vmatprep.subr.mxu0 0.0
    %820 = vmatpush1.msra.mxu0 0.0
    %821 = vmatprep.subr.mxu0 0.0
    %822 = vmatpush1.msra.mxu0 0.0
    %823 = vmatprep.mubr.f32.mxu0 0.0
    %824 = vmatmul.mubr.f32.gmra.mrb[0].mxu0 %v55
    %v825 = vpop.f32.mrb[0].mxu0
    %v826 = vadd.f32 0.0, %v825
    %v827 = vpop.f32.mrb[0].mxu0
    %828 = vmatprep.mubr.f32.mxu0 0.0
    %829 = vmatmul.mubr.f32.gmra.mrb[0].mxu0 %v56
    %v830 = vpop.f32.mrb[0].mxu0
    %v831 = vadd.f32 0.0, %v830
    %v832 = vpop.f32.mrb[0].mxu0
    %833 = vdwg.mxu0
    %834 = vmatprep.subr.mxu0 0.0
    %835 = vmatpush1.msra.mxu0 %v117
    %836 = vmatprep.subr.mxu0 0.0
    %837 = vmatpush1.msra.mxu0 %v118
    %838 = vmatprep.subr.mxu0 0.0
    %839 = vmatpush1.msra.mxu0 %v119
    %840 = vmatprep.subr.mxu0 0.0
    %841 = vmatpush1.msra.mxu0 %v120
    %842 = vmatprep.subr.mxu0 0.0
    %843 = vmatpush1.msra.mxu0 %v121
    %844 = vmatprep.subr.mxu0 0.0
    %845 = vmatpush1.msra.mxu0 %v122
    %846 = vmatprep.subr.mxu0 0.0
    %847 = vmatpush1.msra.mxu0 %v123
    %848 = vmatprep.subr.mxu0 0.0
    %849 = vmatpush1.msra.mxu0 %v124
    %850 = vmatprep.subr.mxu0 0.0
    %851 = vmatpush1.msra.mxu0 %v125
    %852 = vmatprep.subr.mxu0 0.0
    %853 = vmatpush1.msra.mxu0 %v126
    %854 = vmatprep.subr.mxu0 0.0
    %855 = vmatpush1.msra.mxu0 %v127
    %856 = vmatprep.subr.mxu0 0.0
    %857 = vmatpush1.msra.mxu0 %v128
    %858 = vmatprep.subr.mxu0 0.0
    %859 = vmatpush1.msra.mxu0 %v129
    %860 = vmatprep.subr.mxu0 0.0
    %861 = vmatpush1.msra.mxu0 %v130
    %862 = vmatprep.subr.mxu0 0.0
    %863 = vmatpush1.msra.mxu0 %v131
    %864 = vmatprep.subr.mxu0 0.0
    %865 = vmatpush1.msra.mxu0 %v132
    %866 = vmatprep.subr.mxu0 0.0
    %867 = vmatpush1.msra.mxu0 0.0
    %868 = vmatprep.subr.mxu0 0.0
    %869 = vmatpush1.msra.mxu0 0.0
    %870 = vmatprep.subr.mxu0 0.0
    %871 = vmatpush1.msra.mxu0 0.0
    %872 = vmatprep.subr.mxu0 0.0
    %873 = vmatpush1.msra.mxu0 0.0
    %874 = vmatprep.subr.mxu0 0.0
    %875 = vmatpush1.msra.mxu0 0.0
    %876 = vmatprep.subr.mxu0 0.0
    %877 = vmatpush1.msra.mxu0 0.0
    %878 = vmatprep.subr.mxu0 0.0
    %879 = vmatpush1.msra.mxu0 0.0
    %880 = vmatprep.subr.mxu0 0.0
    %881 = vmatpush1.msra.mxu0 0.0
    %882 = vmatprep.subr.mxu0 0.0
    %883 = vmatpush1.msra.mxu0 0.0
    %884 = vmatprep.subr.mxu0 0.0
    %885 = vmatpush1.msra.mxu0 0.0
    %886 = vmatprep.subr.mxu0 0.0
    %887 = vmatpush1.msra.mxu0 0.0
    %888 = vmatprep.subr.mxu0 0.0
    %889 = vmatpush1.msra.mxu0 0.0
    %890 = vmatprep.subr.mxu0 0.0
    %891 = vmatpush1.msra.mxu0 0.0
    %892 = vmatprep.subr.mxu0 0.0
    %893 = vmatpush1.msra.mxu0 0.0
    %894 = vmatprep.subr.mxu0 0.0
    %895 = vmatpush1.msra.mxu0 0.0
    %896 = vmatprep.subr.mxu0 0.0
    %897 = vmatpush1.msra.mxu0 0.0
    %898 = vmatprep.mubr.f32.mxu0 0.0
    %899 = vmatmul.mubr.f32.gmra.mrb[0].mxu0 %v58
    %v900 = vpop.f32.mrb[0].mxu0
    %v901 = vadd.f32 0.0, %v900
    %v902 = vpop.f32.mrb[0].mxu0
    %903 = vmatprep.mubr.f32.mxu0 0.0
    %904 = vmatmul.mubr.f32.gmra.mrb[0].mxu0 %v59
    %v905 = vpop.f32.mrb[0].mxu0
    %v906 = vadd.f32 0.0, %v905
    %v907 = vpop.f32.mrb[0].mxu0
    %908 = vdwg.mxu0
    %v909 = vsub.f32 %v826, %v901
    %v910 = vsub.f32 %v831, %v906
    %911 = vmatprep.subr.mxu0 0.0
    %912 = vmatpush1.msra.mxu0 %v66
    %913 = vmatprep.subr.mxu0 0.0
    %914 = vmatpush1.msra.mxu0 %v67
    %915 = vmatprep.subr.mxu0 0.0
    %916 = vmatpush1.msra.mxu0 %v68
    %917 = vmatprep.subr.mxu0 0.0
    %918 = vmatpush1.msra.mxu0 %v69
    %919 = vmatprep.subr.mxu0 0.0
    %920 = vmatpush1.msra.mxu0 %v70
    %921 = vmatprep.subr.mxu0 0.0
    %922 = vmatpush1.msra.mxu0 %v71
    %923 = vmatprep.subr.mxu0 0.0
    %924 = vmatpush1.msra.mxu0 %v72
    %925 = vmatprep.subr.mxu0 0.0
    %926 = vmatpush1.msra.mxu0 %v73
    %927 = vmatprep.subr.mxu0 0.0
    %928 = vmatpush1.msra.mxu0 %v74
    %929 = vmatprep.subr.mxu0 0.0
    %930 = vmatpush1.msra.mxu0 %v75
    %931 = vmatprep.subr.mxu0 0.0
    %932 = vmatpush1.msra.mxu0 %v76
    %933 = vmatprep.subr.mxu0 0.0
    %934 = vmatpush1.msra.mxu0 %v77
    %935 = vmatprep.subr.mxu0 0.0
    %936 = vmatpush1.msra.mxu0 %v78
    %937 = vmatprep.subr.mxu0 0.0
    %938 = vmatpush1.msra.mxu0 %v79
    %939 = vmatprep.subr.mxu0 0.0
    %940 = vmatpush1.msra.mxu0 %v80
    %941 = vmatprep.subr.mxu0 0.0
    %942 = vmatpush1.msra.mxu0 %v81
    %943 = vmatprep.subr.mxu0 0.0
    %944 = vmatpush1.msra.mxu0 0.0
    %945 = vmatprep.subr.mxu0 0.0
    %946 = vmatpush1.msra.mxu0 0.0
    %947 = vmatprep.subr.mxu0 0.0
    %948 = vmatpush1.msra.mxu0 0.0
    %949 = vmatprep.subr.mxu0 0.0
    %950 = vmatpush1.msra.mxu0 0.0
    %951 = vmatprep.subr.mxu0 0.0
    %952 = vmatpush1.msra.mxu0 0.0
    %953 = vmatprep.subr.mxu0 0.0
    %954 = vmatpush1.msra.mxu0 0.0
    %955 = vmatprep.subr.mxu0 0.0
    %956 = vmatpush1.msra.mxu0 0.0
    %957 = vmatprep.subr.mxu0 0.0
    %958 = vmatpush1.msra.mxu0 0.0
    %959 = vmatprep.subr.mxu0 0.0
    %960 = vmatpush1.msra.mxu0 0.0
    %961 = vmatprep.subr.mxu0 0.0
    %962 = vmatpush1.msra.mxu0 0.0
    %963 = vmatprep.subr.mxu0 0.0
    %964 = vmatpush1.msra.mxu0 0.0
    %965 = vmatprep.subr.mxu0 0.0
    %966 = vmatpush1.msra.mxu0 0.0
    %967 = vmatprep.subr.mxu0 0.0
    %968 = vmatpush1.msra.mxu0 0.0
    %969 = vmatprep.subr.mxu0 0.0
    %970 = vmatpush1.msra.mxu0 0.0
    %971 = vmatprep.subr.mxu0 0.0
    %972 = vmatpush1.msra.mxu0 0.0
    %973 = vmatprep.subr.mxu0 0.0
    %974 = vmatpush1.msra.mxu0 0.0
    %975 = vmatprep.mubr.f32.mxu0 0.0
    %976 = vmatmul.mubr.f32.gmra.mrb[0].mxu0 %v61
    %v977 = vpop.f32.mrb[0].mxu0
    %v978 = vadd.f32 0.0, %v977
    %v979 = vpop.f32.mrb[0].mxu0
    %980 = vmatprep.mubr.f32.mxu0 0.0
    %981 = vmatmul.mubr.f32.gmra.mrb[0].mxu0 %v62
    %v982 = vpop.f32.mrb[0].mxu0
    %v983 = vadd.f32 0.0, %v982
    %v984 = vpop.f32.mrb[0].mxu0
    %985 = vdwg.mxu0
    %v986 = vadd.f32 %v909, %v978
    %v987 = vadd.f32 %v910, %v983
    %988 = vmatprep.subr.mxu0 0.0
    %989 = vmatpush1.msra.mxu0 %v83
    %990 = vmatprep.subr.mxu0 0.0
    %991 = vmatpush1.msra.mxu0 %v84
    %992 = vmatprep.subr.mxu0 0.0
    %993 = vmatpush1.msra.mxu0 %v85
    %994 = vmatprep.subr.mxu0 0.0
    %995 = vmatpush1.msra.mxu0 %v86
    %996 = vmatprep.subr.mxu0 0.0
    %997 = vmatpush1.msra.mxu0 %v87
    %998 = vmatprep.subr.mxu0 0.0
    %999 = vmatpush1.msra.mxu0 %v88
    %1000 = vmatprep.subr.mxu0 0.0
    %1001 = vmatpush1.msra.mxu0 %v89
    %1002 = vmatprep.subr.mxu0 0.0
    %1003 = vmatpush1.msra.mxu0 %v90
    %1004 = vmatprep.subr.mxu0 0.0
    %1005 = vmatpush1.msra.mxu0 %v91
    %1006 = vmatprep.subr.mxu0 0.0
    %1007 = vmatpush1.msra.mxu0 %v92
    %1008 = vmatprep.subr.mxu0 0.0
    %1009 = vmatpush1.msra.mxu0 %v93
    %1010 = vmatprep.subr.mxu0 0.0
    %1011 = vmatpush1.msra.mxu0 %v94
    %1012 = vmatprep.subr.mxu0 0.0
    %1013 = vmatpush1.msra.mxu0 %v95
    %1014 = vmatprep.subr.mxu0 0.0
    %1015 = vmatpush1.msra.mxu0 %v96
    %1016 = vmatprep.subr.mxu0 0.0
    %1017 = vmatpush1.msra.mxu0 %v97
    %1018 = vmatprep.subr.mxu0 0.0
    %1019 = vmatpush1.msra.mxu0 %v98
    %1020 = vmatprep.subr.mxu0 0.0
    %1021 = vmatpush1.msra.mxu0 0.0
    %1022 = vmatprep.subr.mxu0 0.0
    %1023 = vmatpush1.msra.mxu0 0.0
    %1024 = vmatprep.subr.mxu0 0.0
    %1025 = vmatpush1.msra.mxu0 0.0
    %1026 = vmatprep.subr.mxu0 0.0
    %1027 = vmatpush1.msra.mxu0 0.0
    %1028 = vmatprep.subr.mxu0 0.0
    %1029 = vmatpush1.msra.mxu0 0.0
    %1030 = vmatprep.subr.mxu0 0.0
    %1031 = vmatpush1.msra.mxu0 0.0
    %1032 = vmatprep.subr.mxu0 0.0
    %1033 = vmatpush1.msra.mxu0 0.0
    %1034 = vmatprep.subr.mxu0 0.0
    %1035 = vmatpush1.msra.mxu0 0.0
    %1036 = vmatprep.subr.mxu0 0.0
    %1037 = vmatpush1.msra.mxu0 0.0
    %1038 = vmatprep.subr.mxu0 0.0
    %1039 = vmatpush1.msra.mxu0 0.0
    %1040 = vmatprep.subr.mxu0 0.0
    %1041 = vmatpush1.msra.mxu0 0.0
    %1042 = vmatprep.subr.mxu0 0.0
    %1043 = vmatpush1.msra.mxu0 0.0
    %1044 = vmatprep.subr.mxu0 0.0
    %1045 = vmatpush1.msra.mxu0 0.0
    %1046 = vmatprep.subr.mxu0 0.0
    %1047 = vmatpush1.msra.mxu0 0.0
    %1048 = vmatprep.subr.mxu0 0.0
    %1049 = vmatpush1.msra.mxu0 0.0
    %1050 = vmatprep.subr.mxu0 0.0
    %1051 = vmatpush1.msra.mxu0 0.0
    %1052 = vmatprep.mubr.f32.mxu0 0.0
    %1053 = vmatmul.mubr.f32.gmra.mrb[0].mxu0 %v64
    %v1054 = vpop.f32.mrb[0].mxu0
    %v1055 = vadd.f32 0.0, %v1054
    %v1056 = vpop.f32.mrb[0].mxu0
    %1057 = vmatprep.mubr.f32.mxu0 0.0
    %1058 = vmatmul.mubr.f32.gmra.mrb[0].mxu0 %v65
    %v1059 = vpop.f32.mrb[0].mxu0
    %v1060 = vadd.f32 0.0, %v1059
    %v1061 = vpop.f32.mrb[0].mxu0
    %1062 = vdwg.mxu0
    %v1063 = vadd.f32 %v986, %v1055
    %v1064 = vadd.f32 %v987, %v1060
    %v1065 = vadd.f32 %v757, %v1063
    %v1066 = vadd.f32 %v758, %v1064
    %1067 = vst [vmem:[%s756] sm:$0xff] %v1065
    %1068 = vst [vmem:[%s756 + $0x8] sm:$0xff] %v1066
    %s1069 = scalar_lea.vmem [#allocation2], 48
    %v1070 = vld [vmem:[%s1069] sm:$0xff]
    %v1071 = vld [vmem:[%s1069 + $0x8] sm:$0xff]
    %1072 = vmatprep.subr.mxu0 0.0
    %1073 = vmatpush1.msra.mxu0 %v100
    %1074 = vmatprep.subr.mxu0 0.0
    %1075 = vmatpush1.msra.mxu0 %v101
    %1076 = vmatprep.subr.mxu0 0.0
    %1077 = vmatpush1.msra.mxu0 %v102
    %1078 = vmatprep.subr.mxu0 0.0
    %1079 = vmatpush1.msra.mxu0 %v103
    %1080 = vmatprep.subr.mxu0 0.0
    %1081 = vmatpush1.msra.mxu0 %v104
    %1082 = vmatprep.subr.mxu0 0.0
    %1083 = vmatpush1.msra.mxu0 %v105
    %1084 = vmatprep.subr.mxu0 0.0
    %1085 = vmatpush1.msra.mxu0 %v106
    %1086 = vmatprep.subr.mxu0 0.0
    %1087 = vmatpush1.msra.mxu0 %v107
    %1088 = vmatprep.subr.mxu0 0.0
    %1089 = vmatpush1.msra.mxu0 %v108
    %1090 = vmatprep.subr.mxu0 0.0
    %1091 = vmatpush1.msra.mxu0 %v109
    %1092 = vmatprep.subr.mxu0 0.0
    %1093 = vmatpush1.msra.mxu0 %v110
    %1094 = vmatprep.subr.mxu0 0.0
    %1095 = vmatpush1.msra.mxu0 %v111
    %1096 = vmatprep.subr.mxu0 0.0
    %1097 = vmatpush1.msra.mxu0 %v112
    %1098 = vmatprep.subr.mxu0 0.0
    %1099 = vmatpush1.msra.mxu0 %v113
    %1100 = vmatprep.subr.mxu0 0.0
    %1101 = vmatpush1.msra.mxu0 %v114
    %1102 = vmatprep.subr.mxu0 0.0
    %1103 = vmatpush1.msra.mxu0 %v115
    %1104 = vmatprep.subr.mxu0 0.0
    %1105 = vmatpush1.msra.mxu0 0.0
    %1106 = vmatprep.subr.mxu0 0.0
    %1107 = vmatpush1.msra.mxu0 0.0
    %1108 = vmatprep.subr.mxu0 0.0
    %1109 = vmatpush1.msra.mxu0 0.0
    %1110 = vmatprep.subr.mxu0 0.0
    %1111 = vmatpush1.msra.mxu0 0.0
    %1112 = vmatprep.subr.mxu0 0.0
    %1113 = vmatpush1.msra.mxu0 0.0
    %1114 = vmatprep.subr.mxu0 0.0
    %1115 = vmatpush1.msra.mxu0 0.0
    %1116 = vmatprep.subr.mxu0 0.0
    %1117 = vmatpush1.msra.mxu0 0.0
    %1118 = vmatprep.subr.mxu0 0.0
    %1119 = vmatpush1.msra.mxu0 0.0
    %1120 = vmatprep.subr.mxu0 0.0
    %1121 = vmatpush1.msra.mxu0 0.0
    %1122 = vmatprep.subr.mxu0 0.0
    %1123 = vmatpush1.msra.mxu0 0.0
    %1124 = vmatprep.subr.mxu0 0.0
    %1125 = vmatpush1.msra.mxu0 0.0
    %1126 = vmatprep.subr.mxu0 0.0
    %1127 = vmatpush1.msra.mxu0 0.0
    %1128 = vmatprep.subr.mxu0 0.0
    %1129 = vmatpush1.msra.mxu0 0.0
    %1130 = vmatprep.subr.mxu0 0.0
    %1131 = vmatpush1.msra.mxu0 0.0
    %1132 = vmatprep.subr.mxu0 0.0
    %1133 = vmatpush1.msra.mxu0 0.0
    %1134 = vmatprep.subr.mxu0 0.0
    %1135 = vmatpush1.msra.mxu0 0.0
    %1136 = vmatprep.mubr.f32.mxu0 0.0
    %1137 = vmatmul.mubr.f32.gmra.mrb[0].mxu0 %v58
    %v1138 = vpop.f32.mrb[0].mxu0
    %v1139 = vadd.f32 0.0, %v1138
    %v1140 = vpop.f32.mrb[0].mxu0
    %1141 = vmatprep.mubr.f32.mxu0 0.0
    %1142 = vmatmul.mubr.f32.gmra.mrb[0].mxu0 %v59
    %v1143 = vpop.f32.mrb[0].mxu0
    %v1144 = vadd.f32 0.0, %v1143
    %v1145 = vpop.f32.mrb[0].mxu0
    %1146 = vdwg.mxu0
    %1147 = vmatprep.subr.mxu0 0.0
    %1148 = vmatpush1.msra.mxu0 %v117
    %1149 = vmatprep.subr.mxu0 0.0
    %1150 = vmatpush1.msra.mxu0 %v118
    %1151 = vmatprep.subr.mxu0 0.0
    %1152 = vmatpush1.msra.mxu0 %v119
    %1153 = vmatprep.subr.mxu0 0.0
    %1154 = vmatpush1.msra.mxu0 %v120
    %1155 = vmatprep.subr.mxu0 0.0
    %1156 = vmatpush1.msra.mxu0 %v121
    %1157 = vmatprep.subr.mxu0 0.0
    %1158 = vmatpush1.msra.mxu0 %v122
    %1159 = vmatprep.subr.mxu0 0.0
    %1160 = vmatpush1.msra.mxu0 %v123
    %1161 = vmatprep.subr.mxu0 0.0
    %1162 = vmatpush1.msra.mxu0 %v124
    %1163 = vmatprep.subr.mxu0 0.0
    %1164 = vmatpush1.msra.mxu0 %v125
    %1165 = vmatprep.subr.mxu0 0.0
    %1166 = vmatpush1.msra.mxu0 %v126
    %1167 = vmatprep.subr.mxu0 0.0
    %1168 = vmatpush1.msra.mxu0 %v127
    %1169 = vmatprep.subr.mxu0 0.0
    %1170 = vmatpush1.msra.mxu0 %v128
    %1171 = vmatprep.subr.mxu0 0.0
    %1172 = vmatpush1.msra.mxu0 %v129
    %1173 = vmatprep.subr.mxu0 0.0
    %1174 = vmatpush1.msra.mxu0 %v130
    %1175 = vmatprep.subr.mxu0 0.0
    %1176 = vmatpush1.msra.mxu0 %v131
    %1177 = vmatprep.subr.mxu0 0.0
    %1178 = vmatpush1.msra.mxu0 %v132
    %1179 = vmatprep.subr.mxu0 0.0
    %1180 = vmatpush1.msra.mxu0 0.0
    %1181 = vmatprep.subr.mxu0 0.0
    %1182 = vmatpush1.msra.mxu0 0.0
    %1183 = vmatprep.subr.mxu0 0.0
    %1184 = vmatpush1.msra.mxu0 0.0
    %1185 = vmatprep.subr.mxu0 0.0
    %1186 = vmatpush1.msra.mxu0 0.0
    %1187 = vmatprep.subr.mxu0 0.0
    %1188 = vmatpush1.msra.mxu0 0.0
    %1189 = vmatprep.subr.mxu0 0.0
    %1190 = vmatpush1.msra.mxu0 0.0
    %1191 = vmatprep.subr.mxu0 0.0
    %1192 = vmatpush1.msra.mxu0 0.0
    %1193 = vmatprep.subr.mxu0 0.0
    %1194 = vmatpush1.msra.mxu0 0.0
    %1195 = vmatprep.subr.mxu0 0.0
    %1196 = vmatpush1.msra.mxu0 0.0
    %1197 = vmatprep.subr.mxu0 0.0
    %1198 = vmatpush1.msra.mxu0 0.0
    %1199 = vmatprep.subr.mxu0 0.0
    %1200 = vmatpush1.msra.mxu0 0.0
    %1201 = vmatprep.subr.mxu0 0.0
    %1202 = vmatpush1.msra.mxu0 0.0
    %1203 = vmatprep.subr.mxu0 0.0
    %1204 = vmatpush1.msra.mxu0 0.0
    %1205 = vmatprep.subr.mxu0 0.0
    %1206 = vmatpush1.msra.mxu0 0.0
    %1207 = vmatprep.subr.mxu0 0.0
    %1208 = vmatpush1.msra.mxu0 0.0
    %1209 = vmatprep.subr.mxu0 0.0
    %1210 = vmatpush1.msra.mxu0 0.0
    %1211 = vmatprep.mubr.f32.mxu0 0.0
    %1212 = vmatmul.mubr.f32.gmra.mrb[0].mxu0 %v55
    %v1213 = vpop.f32.mrb[0].mxu0
    %v1214 = vadd.f32 %v1139, %v1213
    %v1215 = vpop.f32.mrb[0].mxu0
    %1216 = vmatprep.mubr.f32.mxu0 0.0
    %1217 = vmatmul.mubr.f32.gmra.mrb[0].mxu0 %v56
    %v1218 = vpop.f32.mrb[0].mxu0
    %v1219 = vadd.f32 %v1144, %v1218
    %v1220 = vpop.f32.mrb[0].mxu0
    %1221 = vdwg.mxu0
    %1222 = vmatprep.subr.mxu0 0.0
    %1223 = vmatpush1.msra.mxu0 %v83
    %1224 = vmatprep.subr.mxu0 0.0
    %1225 = vmatpush1.msra.mxu0 %v84
    %1226 = vmatprep.subr.mxu0 0.0
    %1227 = vmatpush1.msra.mxu0 %v85
    %1228 = vmatprep.subr.mxu0 0.0
    %1229 = vmatpush1.msra.mxu0 %v86
    %1230 = vmatprep.subr.mxu0 0.0
    %1231 = vmatpush1.msra.mxu0 %v87
    %1232 = vmatprep.subr.mxu0 0.0
    %1233 = vmatpush1.msra.mxu0 %v88
    %1234 = vmatprep.subr.mxu0 0.0
    %1235 = vmatpush1.msra.mxu0 %v89
    %1236 = vmatprep.subr.mxu0 0.0
    %1237 = vmatpush1.msra.mxu0 %v90
    %1238 = vmatprep.subr.mxu0 0.0
    %1239 = vmatpush1.msra.mxu0 %v91
    %1240 = vmatprep.subr.mxu0 0.0
    %1241 = vmatpush1.msra.mxu0 %v92
    %1242 = vmatprep.subr.mxu0 0.0
    %1243 = vmatpush1.msra.mxu0 %v93
    %1244 = vmatprep.subr.mxu0 0.0
    %1245 = vmatpush1.msra.mxu0 %v94
    %1246 = vmatprep.subr.mxu0 0.0
    %1247 = vmatpush1.msra.mxu0 %v95
    %1248 = vmatprep.subr.mxu0 0.0
    %1249 = vmatpush1.msra.mxu0 %v96
    %1250 = vmatprep.subr.mxu0 0.0
    %1251 = vmatpush1.msra.mxu0 %v97
    %1252 = vmatprep.subr.mxu0 0.0
    %1253 = vmatpush1.msra.mxu0 %v98
    %1254 = vmatprep.subr.mxu0 0.0
    %1255 = vmatpush1.msra.mxu0 0.0
    %1256 = vmatprep.subr.mxu0 0.0
    %1257 = vmatpush1.msra.mxu0 0.0
    %1258 = vmatprep.subr.mxu0 0.0
    %1259 = vmatpush1.msra.mxu0 0.0
    %1260 = vmatprep.subr.mxu0 0.0
    %1261 = vmatpush1.msra.mxu0 0.0
    %1262 = vmatprep.subr.mxu0 0.0
    %1263 = vmatpush1.msra.mxu0 0.0
    %1264 = vmatprep.subr.mxu0 0.0
    %1265 = vmatpush1.msra.mxu0 0.0
    %1266 = vmatprep.subr.mxu0 0.0
    %1267 = vmatpush1.msra.mxu0 0.0
    %1268 = vmatprep.subr.mxu0 0.0
    %1269 = vmatpush1.msra.mxu0 0.0
    %1270 = vmatprep.subr.mxu0 0.0
    %1271 = vmatpush1.msra.mxu0 0.0
    %1272 = vmatprep.subr.mxu0 0.0
    %1273 = vmatpush1.msra.mxu0 0.0
    %1274 = vmatprep.subr.mxu0 0.0
    %1275 = vmatpush1.msra.mxu0 0.0
    %1276 = vmatprep.subr.mxu0 0.0
    %1277 = vmatpush1.msra.mxu0 0.0
    %1278 = vmatprep.subr.mxu0 0.0
    %1279 = vmatpush1.msra.mxu0 0.0
    %1280 = vmatprep.subr.mxu0 0.0
    %1281 = vmatpush1.msra.mxu0 0.0
    %1282 = vmatprep.subr.mxu0 0.0
    %1283 = vmatpush1.msra.mxu0 0.0
    %1284 = vmatprep.subr.mxu0 0.0
    %1285 = vmatpush1.msra.mxu0 0.0
    %1286 = vmatprep.mubr.f32.mxu0 0.0
    %1287 = vmatmul.mubr.f32.gmra.mrb[0].mxu0 %v61
    %v1288 = vpop.f32.mrb[0].mxu0
    %v1289 = vadd.f32 0.0, %v1288
    %v1290 = vpop.f32.mrb[0].mxu0
    %1291 = vmatprep.mubr.f32.mxu0 0.0
    %1292 = vmatmul.mubr.f32.gmra.mrb[0].mxu0 %v62
    %v1293 = vpop.f32.mrb[0].mxu0
    %v1294 = vadd.f32 0.0, %v1293
    %v1295 = vpop.f32.mrb[0].mxu0
    %1296 = vdwg.mxu0
    %v1297 = vsub.f32 %v1214, %v1289
    %v1298 = vsub.f32 %v1219, %v1294
    %1299 = vmatprep.subr.mxu0 0.0
    %1300 = vmatpush1.msra.mxu0 %v66
    %1301 = vmatprep.subr.mxu0 0.0
    %1302 = vmatpush1.msra.mxu0 %v67
    %1303 = vmatprep.subr.mxu0 0.0
    %1304 = vmatpush1.msra.mxu0 %v68
    %1305 = vmatprep.subr.mxu0 0.0
    %1306 = vmatpush1.msra.mxu0 %v69
    %1307 = vmatprep.subr.mxu0 0.0
    %1308 = vmatpush1.msra.mxu0 %v70
    %1309 = vmatprep.subr.mxu0 0.0
    %1310 = vmatpush1.msra.mxu0 %v71
    %1311 = vmatprep.subr.mxu0 0.0
    %1312 = vmatpush1.msra.mxu0 %v72
    %1313 = vmatprep.subr.mxu0 0.0
    %1314 = vmatpush1.msra.mxu0 %v73
    %1315 = vmatprep.subr.mxu0 0.0
    %1316 = vmatpush1.msra.mxu0 %v74
    %1317 = vmatprep.subr.mxu0 0.0
    %1318 = vmatpush1.msra.mxu0 %v75
    %1319 = vmatprep.subr.mxu0 0.0
    %1320 = vmatpush1.msra.mxu0 %v76
    %1321 = vmatprep.subr.mxu0 0.0
    %1322 = vmatpush1.msra.mxu0 %v77
    %1323 = vmatprep.subr.mxu0 0.0
    %1324 = vmatpush1.msra.mxu0 %v78
    %1325 = vmatprep.subr.mxu0 0.0
    %1326 = vmatpush1.msra.mxu0 %v79
    %1327 = vmatprep.subr.mxu0 0.0
    %1328 = vmatpush1.msra.mxu0 %v80
    %1329 = vmatprep.subr.mxu0 0.0
    %1330 = vmatpush1.msra.mxu0 %v81
    %1331 = vmatprep.subr.mxu0 0.0
    %1332 = vmatpush1.msra.mxu0 0.0
    %1333 = vmatprep.subr.mxu0 0.0
    %1334 = vmatpush1.msra.mxu0 0.0
    %1335 = vmatprep.subr.mxu0 0.0
    %1336 = vmatpush1.msra.mxu0 0.0
    %1337 = vmatprep.subr.mxu0 0.0
    %1338 = vmatpush1.msra.mxu0 0.0
    %1339 = vmatprep.subr.mxu0 0.0
    %1340 = vmatpush1.msra.mxu0 0.0
    %1341 = vmatprep.subr.mxu0 0.0
    %1342 = vmatpush1.msra.mxu0 0.0
    %1343 = vmatprep.subr.mxu0 0.0
    %1344 = vmatpush1.msra.mxu0 0.0
    %1345 = vmatprep.subr.mxu0 0.0
    %1346 = vmatpush1.msra.mxu0 0.0
    %1347 = vmatprep.subr.mxu0 0.0
    %1348 = vmatpush1.msra.mxu0 0.0
    %1349 = vmatprep.subr.mxu0 0.0
    %1350 = vmatpush1.msra.mxu0 0.0
    %1351 = vmatprep.subr.mxu0 0.0
    %1352 = vmatpush1.msra.mxu0 0.0
    %1353 = vmatprep.subr.mxu0 0.0
    %1354 = vmatpush1.msra.mxu0 0.0
    %1355 = vmatprep.subr.mxu0 0.0
    %1356 = vmatpush1.msra.mxu0 0.0
    %1357 = vmatprep.subr.mxu0 0.0
    %1358 = vmatpush1.msra.mxu0 0.0
    %1359 = vmatprep.subr.mxu0 0.0
    %1360 = vmatpush1.msra.mxu0 0.0
    %1361 = vmatprep.subr.mxu0 0.0
    %1362 = vmatpush1.msra.mxu0 0.0
    %1363 = vmatprep.mubr.f32.mxu0 0.0
    %1364 = vmatmul.mubr.f32.gmra.mrb[0].mxu0 %v64
    %v1365 = vpop.f32.mrb[0].mxu0
    %v1366 = vadd.f32 0.0, %v1365
    %v1367 = vpop.f32.mrb[0].mxu0
    %1368 = vmatprep.mubr.f32.mxu0 0.0
    %1369 = vmatmul.mubr.f32.gmra.mrb[0].mxu0 %v65
    %v1370 = vpop.f32.mrb[0].mxu0
    %v1371 = vadd.f32 0.0, %v1370
    %v1372 = vpop.f32.mrb[0].mxu0
    %1373 = vdwg.mxu0
    %v1374 = vadd.f32 %v1297, %v1366
    %v1375 = vadd.f32 %v1298, %v1371
    %v1376 = vadd.f32 %v1070, %v1374
    %v1377 = vadd.f32 %v1071, %v1375
    %1378 = vst [vmem:[%s1069] sm:$0xff] %v1376
    %1379 = vst [vmem:[%s1069 + $0x8] sm:$0xff] %v1377
    // Predicated region
    $region26: #{tpu_custom_call.1} parent=1 // pred_check
      %p1380 = pneg %p43
    $region27: #{tpu_custom_call.1} parent=1 // pred_check_branch
      %1382 = sbr.rel (%p1380) target = $region29
    $region28: #{tpu_custom_call.1} parent=1 // pred_region
      %v1383 = vld [vmem:[#allocation2] sm:$0xff]
      %v1384 = vld [vmem:[#allocation2 + $0x8] sm:$0xff]
      %v1385 = vld [vmem:[#allocation2 + $0x10] sm:$0xff]
      %v1386 = vld [vmem:[#allocation2 + $0x18] sm:$0xff]
      %v1387 = vld [vmem:[#allocation2 + $0x20] sm:$0xff]
      %v1388 = vld [vmem:[#allocation2 + $0x28] sm:$0xff]
      %v1389 = vld [vmem:[#allocation2 + $0x30] sm:$0xff]
      %v1390 = vld [vmem:[#allocation2 + $0x38] sm:$0xff]
      %v1391 = vld [vmem:[%s2] sm:$0x1]
      %v1392 = vld [vmem:[%s2 + $0x1] sm:$0x1]
      %v1393 = vld [vmem:[%s2 + $0x2] sm:$0x1]
      %v1394 = vld [vmem:[%s2 + $0x3] sm:$0x1]
      %v1399 = vlaneseq
      %v1400 = vshrl.u32 %v1399, 7
      %v1401 = vsub.s32 0, %v1400
      %v1402 = vrot.slane %v1391, %v1401
      %v1403 = vlaneseq
      %v1404 = vshrl.u32 %v1403, 7
      %v1405 = vsub.s32 0, %v1404
      %v1406 = vrot.slane %v1392, %v1405
      %v1407 = vlaneseq
      %v1408 = vshrl.u32 %v1407, 7
      %v1409 = vsub.s32 0, %v1408
      %v1410 = vrot.slane %v1393, %v1409
      %v1411 = vlaneseq
      %v1412 = vshrl.u32 %v1411, 7
      %v1413 = vsub.s32 0, %v1412
      %v1414 = vrot.slane %v1394, %v1413
      %v1419 = vadd.f32 %v1383, %v1402
      %v1420 = vadd.f32 %v1384, %v1402
      %v1421 = vadd.f32 %v1385, %v1406
      %v1422 = vadd.f32 %v1386, %v1406
      %v1423 = vadd.f32 %v1387, %v1410
      %v1424 = vadd.f32 %v1388, %v1410
      %v1425 = vadd.f32 %v1389, %v1414
      %v1426 = vadd.f32 %v1390, %v1414
      %1427 = vst [vmem:[#allocation8] sm:$0xff] %v1419
      %1428 = vst [vmem:[#allocation8 + $0x8] sm:$0xff] %v1420
      %1429 = vst [vmem:[#allocation8 + $0x10] sm:$0xff] %v1421
      %1430 = vst [vmem:[#allocation8 + $0x18] sm:$0xff] %v1422
      %1431 = vst [vmem:[#allocation8 + $0x20] sm:$0xff] %v1423
      %1432 = vst [vmem:[#allocation8 + $0x28] sm:$0xff] %v1424
      %1433 = vst [vmem:[#allocation8 + $0x30] sm:$0xff] %v1425
      %1434 = vst [vmem:[#allocation8 + $0x38] sm:$0xff] %v1426
    $region29: #{tpu_custom_call.1} parent=1 // pred_fallthru
      _
    // Predicated region
    $region30: #{tpu_custom_call.1} parent=1 // pred_check
      _
    $region31: #{tpu_custom_call.1} parent=1 // pred_check_branch
      %1436 = sbr.rel (0) target = $region33
    $region32: #{tpu_custom_call.1} parent=1 // pred_region
      %s1438 = ssub.s32 1024, 1024
      %1439 = vsyncadd [#allocation5], %s1438
      %s1440 = sshll.u32 [#allocation8], 4
      %s1441 = int_to_ptr.vmem [resolvable:$true] %s1440
      %1446 = dma.vmem_to_hbm [thread:$0]  %s1441, 1024, %s3, [#allocation5], 128, 128, 8
    $region33: #{tpu_custom_call.1} parent=1 // pred_fallthru
      _
    // Predicated region
    $region34: #{tpu_custom_call.1} parent=1 // pred_check
      _
    $region35: #{tpu_custom_call.1} parent=1 // pred_check_branch
      %1448 = sbr.rel (0) target = $region37
    $region36: #{tpu_custom_call.1} parent=1 // pred_region
      %1449 = dma.done [#allocation5], 1024
    $region37: #{tpu_custom_call.1} parent=1 // pred_fallthru
      _
    %1450 = vsyncpa [#allocation4], 1
    %1451 = vsyncpa [#allocation7], 1
    %1452 = vsyncpa [#allocation5], 1

</llo_original>
